<compile_context>
chip_gen: v6e
topology: v6e:2x2x1
jax: 0.10.0
libtpu: 0.0.40
codegen_flags: <defaults>
</compile_context>

<pallas_src>
import jax
import jax.numpy as jnp
from jax.experimental import pallas as pl
from jax.experimental.pallas import tpu as pltpu

# Hidden layer widths of GrowthNN.
_DIMS = [64, 128, 256, 128, 64, 32, 1]


def _round_up(n, m):
    return (n + m - 1) // m * m


def _mlp_kernel(x_ref, *refs):
    # refs = (w1, b1, ..., w6, b6, w7_T, b7, out_ref)
    out_ref = refs[-1]
    param_refs = refs[:-1]
    n_layers = len(param_refs) // 2

    h = x_ref[...].astype(jnp.float32)

    # Hidden layers: bf16 MXU matmul, f32 accumulate, ReLU.
    for i in range(n_layers - 1):
        w = param_refs[2 * i][...]          # bf16 (in, out)
        b = param_refs[2 * i + 1][...]      # f32  (1, out)
        h = jnp.dot(h.astype(jnp.bfloat16), w,
                    preferred_element_type=jnp.float32) + b
        h = jnp.maximum(h, 0.0)

    # Final 32 -> 1 layer as a VPU multiply + lane reduce (avoids an N=1 MXU
    # op and its result-FIFO drain). Weight arrives transposed as (1, 32) f32.
    wt = param_refs[-2][...]                # f32 (1, 32)
    bl = param_refs[-1][...]                # f32 (1, 1)
    y = jnp.sum(h * wt, axis=-1, keepdims=True) + bl
    out_ref[...] = y.astype(out_ref.dtype)


def growth_nn_forward(x, params, *, batch_tile=512):
    """Fused GrowthNN forward. x: (B, input_size) f32. params: list of (W, b)."""
    B, F = x.shape
    out_dim = params[-1][0].shape[1]        # 1

    # Effective tile: multiple of 8, <= batch_tile, clamped to small batches;
    # keep >= 2 grid steps when the batch is large enough (v7x has 2 TCs).
    tile = min(batch_tile, _round_up(B, 8))
    n_tiles = pl.cdiv(B, tile)
    if n_tiles == 1 and tile >= 512:
        tile = _round_up(tile // 2, 8)
        n_tiles = pl.cdiv(B, tile)
    Bp = n_tiles * tile

    if Bp != B:
        x = jnp.pad(x, ((0, Bp - B), (0, 0)))

    # Hidden-layer weights -> bf16 MXU operands; biases stay f32; last (32, 1)
    # weight is passed transposed (1, 32) f32 for the VPU reduce path.
    n_layers = len(params)
    flat_params = []
    in_specs = [pl.BlockSpec((tile, F), lambda i: (i, 0))]
    for li, (w, b) in enumerate(params):
        if li < n_layers - 1:
            w_in = w.astype(jnp.bfloat16)
        else:
            w_in = w.T.astype(jnp.float32)
        b_in = b.astype(jnp.float32)
        in_specs.append(pl.BlockSpec(w_in.shape, lambda i: (0, 0)))
        in_specs.append(pl.BlockSpec(b_in.shape, lambda i: (0, 0)))
        flat_params.extend([w_in, b_in])

    out_specs = pl.BlockSpec((tile, out_dim), lambda i: (i, 0))

    flops = 2 * Bp * sum(w.shape[0] * w.shape[1] for w, _ in params)
    param_bytes = sum(int(a.size) * a.dtype.itemsize for a in flat_params)
    bytes_accessed = Bp * F * 4 + Bp * out_dim * 4 + param_bytes

    out = pl.pallas_call(
        _mlp_kernel,
        out_shape=jax.ShapeDtypeStruct((Bp, out_dim), jnp.float32),
        grid_spec=pltpu.PrefetchScalarGridSpec(
            num_scalar_prefetch=0,
            grid=(n_tiles,),
            in_specs=in_specs,
            out_specs=out_specs,
        ),
        compiler_params=pltpu.CompilerParams(
            dimension_semantics=("parallel",),
            vmem_limit_bytes=32 * 1024 * 1024,
        ),
        cost_estimate=pl.CostEstimate(
            flops=flops, transcendentals=0, bytes_accessed=bytes_accessed),
    )(x, *flat_params)

    return out[:B]


def init_params(key, input_size):
    """PyTorch-nn.Linear-style init: U[-1/sqrt(fan_in), 1/sqrt(fan_in)]."""
    dims = [input_size] + _DIMS
    params = []
    for i in range(len(_DIMS)):
        fan_in, fan_out = dims[i], dims[i + 1]
        key, kw, kb = jax.random.split(key, 3)
        bound = 1.0 / (fan_in ** 0.5)
        w = jax.random.uniform(kw, (fan_in, fan_out), jnp.float32, -bound, bound)
        b = jax.random.uniform(kb, (1, fan_out), jnp.float32, -bound, bound)
        params.append((w, b))
    return params


def reference_forward(x, params):
    """Mirrors the kernel math (bf16 MXU operands, f32 accumulate, VPU tail)."""
    h = x.astype(jnp.float32)
    for (w, b) in params[:-1]:
        h = jnp.dot(h.astype(jnp.bfloat16), w.astype(jnp.bfloat16),
                    preferred_element_type=jnp.float32) + b
        h = jnp.maximum(h, 0.0)
    w, b = params[-1]
    return jnp.sum(h * w.T, axis=-1, keepdims=True) + b


if __name__ == "__main__":
    key = jax.random.PRNGKey(0)
    input_size = 8
    batch = 200          # non-multiple of the tile: exercises padding + slicing

    kx, kp = jax.random.split(key)
    x = jax.random.normal(kx, (batch, input_size), jnp.float32)
    params = init_params(kp, input_size)

    # Small tile in the test so the grid has 2 steps; production default is 512.
    out = growth_nn_forward(x, params, batch_tile=128)
    out = jax.block_until_ready(out)

    ref = reference_forward(x, params)
    assert out.shape == (batch, 1), out.shape
    assert jnp.allclose(out, ref, atol=1e-3, rtol=1e-3), (
        f"max abs err {jnp.max(jnp.abs(out - ref))}")

    print("KERNEL_OK")
</pallas_src>

<mosaic_0001>
module attributes {stable_mosaic.version = 11 : i64} {
  func.func @_mlp_kernel(%arg0: i32, %arg1: memref<128x8xf32, #tpu.memory_space<vmem>>, %arg2: memref<8x64xbf16, #tpu.memory_space<vmem>>, %arg3: memref<1x64xf32, #tpu.memory_space<vmem>>, %arg4: memref<64x128xbf16, #tpu.memory_space<vmem>>, %arg5: memref<1x128xf32, #tpu.memory_space<vmem>>, %arg6: memref<128x256xbf16, #tpu.memory_space<vmem>>, %arg7: memref<1x256xf32, #tpu.memory_space<vmem>>, %arg8: memref<256x128xbf16, #tpu.memory_space<vmem>>, %arg9: memref<1x128xf32, #tpu.memory_space<vmem>>, %arg10: memref<128x64xbf16, #tpu.memory_space<vmem>>, %arg11: memref<1x64xf32, #tpu.memory_space<vmem>>, %arg12: memref<64x32xbf16, #tpu.memory_space<vmem>>, %arg13: memref<1x32xf32, #tpu.memory_space<vmem>>, %arg14: memref<1x32xf32, #tpu.memory_space<vmem>>, %arg15: memref<1x1xf32, #tpu.memory_space<vmem>>, %arg16: memref<128x1xf32, #tpu.memory_space<vmem>>) attributes {dimension_semantics = [#tpu.dimension_semantics<parallel>], iteration_bounds = array<i64: 2>, scalar_prefetch = 0 : i64, scratch_operands = 0 : i64, tpu.core_type = #tpu.core_type<tc>, window_params = [{transform_indices = @transform_0, window_bounds = array<i64: 128, 8>}, {pipeline_mode = #tpu.pipeline_mode<synchronous>, transform_indices = @transform_1, window_bounds = array<i64: 8, 64>}, {pipeline_mode = #tpu.pipeline_mode<synchronous>, transform_indices = @transform_2, window_bounds = array<i64: 1, 64>}, {pipeline_mode = #tpu.pipeline_mode<synchronous>, transform_indices = @transform_3, window_bounds = array<i64: 64, 128>}, {pipeline_mode = #tpu.pipeline_mode<synchronous>, transform_indices = @transform_4, window_bounds = array<i64: 1, 128>}, {pipeline_mode = #tpu.pipeline_mode<synchronous>, transform_indices = @transform_5, window_bounds = array<i64: 128, 256>}, {pipeline_mode = #tpu.pipeline_mode<synchronous>, transform_indices = @transform_6, window_bounds = array<i64: 1, 256>}, {pipeline_mode = #tpu.pipeline_mode<synchronous>, transform_indices = @transform_7, window_bounds = array<i64: 256, 128>}, {pipeline_mode = #tpu.pipeline_mode<synchronous>, transform_indices = @transform_8, window_bounds = array<i64: 1, 128>}, {pipeline_mode = #tpu.pipeline_mode<synchronous>, transform_indices = @transform_9, window_bounds = array<i64: 128, 64>}, {pipeline_mode = #tpu.pipeline_mode<synchronous>, transform_indices = @transform_10, window_bounds = array<i64: 1, 64>}, {pipeline_mode = #tpu.pipeline_mode<synchronous>, transform_indices = @transform_11, window_bounds = array<i64: 64, 32>}, {pipeline_mode = #tpu.pipeline_mode<synchronous>, transform_indices = @transform_12, window_bounds = array<i64: 1, 32>}, {pipeline_mode = #tpu.pipeline_mode<synchronous>, transform_indices = @transform_13, window_bounds = array<i64: 1, 32>}, {pipeline_mode = #tpu.pipeline_mode<synchronous>, transform_indices = @transform_14, window_bounds = array<i64: 1, 1>}, {transform_indices = @transform_15, window_bounds = array<i64: 128, 1>}]} {
    %c0 = arith.constant 0 : index
    %c0_0 = arith.constant 0 : index
    %0 = vector.load %arg1[%c0, %c0_0] : memref<128x8xf32, #tpu.memory_space<vmem>>, vector<128x8xf32>
    %c0_1 = arith.constant 0 : index
    %c0_2 = arith.constant 0 : index
    %1 = vector.load %arg2[%c0_1, %c0_2] : memref<8x64xbf16, #tpu.memory_space<vmem>>, vector<8x64xbf16>
    %c0_3 = arith.constant 0 : index
    %c0_4 = arith.constant 0 : index
    %2 = vector.load %arg3[%c0_3, %c0_4] : memref<1x64xf32, #tpu.memory_space<vmem>>, vector<1x64xf32>
    %3 = arith.truncf %0 : vector<128x8xf32> to vector<128x8xbf16>
    %cst = arith.constant dense<0.000000e+00> : vector<128x64xf32>
    %4 = tpu.matmul %3, %1, %cst {dimension_numbers = #tpu.dot_dimension_numbers<[1], [0], [0], [1], [0, 0, 1, 1], [], []>} : vector<128x8xbf16>, vector<8x64xbf16>, vector<128x64xf32> -> vector<128x64xf32>
    %5 = vector.broadcast %2 : vector<1x64xf32> to vector<128x64xf32>
    %6 = arith.addf %4, %5 : vector<128x64xf32>
    %cst_5 = arith.constant 0.000000e+00 : f32
    %7 = vector.broadcast %cst_5 : f32 to vector<128x64xf32>
    %8 = arith.maximumf %6, %7 : vector<128x64xf32>
    %c0_6 = arith.constant 0 : index
    %c0_7 = arith.constant 0 : index
    %9 = vector.load %arg4[%c0_6, %c0_7] : memref<64x128xbf16, #tpu.memory_space<vmem>>, vector<64x128xbf16>
    %c0_8 = arith.constant 0 : index
    %c0_9 = arith.constant 0 : index
    %10 = vector.load %arg5[%c0_8, %c0_9] : memref<1x128xf32, #tpu.memory_space<vmem>>, vector<1x128xf32>
    %11 = arith.truncf %8 : vector<128x64xf32> to vector<128x64xbf16>
    %cst_10 = arith.constant dense<0.000000e+00> : vector<128x128xf32>
    %12 = tpu.matmul %11, %9, %cst_10 {dimension_numbers = #tpu.dot_dimension_numbers<[1], [0], [0], [1], [0, 0, 1, 1], [], []>} : vector<128x64xbf16>, vector<64x128xbf16>, vector<128x128xf32> -> vector<128x128xf32>
    %13 = vector.broadcast %10 : vector<1x128xf32> to vector<128x128xf32>
    %14 = arith.addf %12, %13 : vector<128x128xf32>
    %cst_11 = arith.constant 0.000000e+00 : f32
    %15 = vector.broadcast %cst_11 : f32 to vector<128x128xf32>
    %16 = arith.maximumf %14, %15 : vector<128x128xf32>
    %c0_12 = arith.constant 0 : index
    %c0_13 = arith.constant 0 : index
    %17 = vector.load %arg6[%c0_12, %c0_13] : memref<128x256xbf16, #tpu.memory_space<vmem>>, vector<128x256xbf16>
    %c0_14 = arith.constant 0 : index
    %c0_15 = arith.constant 0 : index
    %18 = vector.load %arg7[%c0_14, %c0_15] : memref<1x256xf32, #tpu.memory_space<vmem>>, vector<1x256xf32>
    %19 = arith.truncf %16 : vector<128x128xf32> to vector<128x128xbf16>
    %cst_16 = arith.constant dense<0.000000e+00> : vector<128x256xf32>
    %20 = tpu.matmul %19, %17, %cst_16 {dimension_numbers = #tpu.dot_dimension_numbers<[1], [0], [0], [1], [0, 0, 1, 1], [], []>} : vector<128x128xbf16>, vector<128x256xbf16>, vector<128x256xf32> -> vector<128x256xf32>
    %21 = vector.broadcast %18 : vector<1x256xf32> to vector<128x256xf32>
    %22 = arith.addf %20, %21 : vector<128x256xf32>
    %cst_17 = arith.constant 0.000000e+00 : f32
    %23 = vector.broadcast %cst_17 : f32 to vector<128x256xf32>
    %24 = arith.maximumf %22, %23 : vector<128x256xf32>
    %c0_18 = arith.constant 0 : index
    %c0_19 = arith.constant 0 : index
    %25 = vector.load %arg8[%c0_18, %c0_19] : memref<256x128xbf16, #tpu.memory_space<vmem>>, vector<256x128xbf16>
    %c0_20 = arith.constant 0 : index
    %c0_21 = arith.constant 0 : index
    %26 = vector.load %arg9[%c0_20, %c0_21] : memref<1x128xf32, #tpu.memory_space<vmem>>, vector<1x128xf32>
    %27 = arith.truncf %24 : vector<128x256xf32> to vector<128x256xbf16>
    %cst_22 = arith.constant dense<0.000000e+00> : vector<128x128xf32>
    %28 = tpu.matmul %27, %25, %cst_22 {dimension_numbers = #tpu.dot_dimension_numbers<[1], [0], [0], [1], [0, 0, 1, 1], [], []>} : vector<128x256xbf16>, vector<256x128xbf16>, vector<128x128xf32> -> vector<128x128xf32>
    %29 = vector.broadcast %26 : vector<1x128xf32> to vector<128x128xf32>
    %30 = arith.addf %28, %29 : vector<128x128xf32>
    %cst_23 = arith.constant 0.000000e+00 : f32
    %31 = vector.broadcast %cst_23 : f32 to vector<128x128xf32>
    %32 = arith.maximumf %30, %31 : vector<128x128xf32>
    %c0_24 = arith.constant 0 : index
    %c0_25 = arith.constant 0 : index
    %33 = vector.load %arg10[%c0_24, %c0_25] : memref<128x64xbf16, #tpu.memory_space<vmem>>, vector<128x64xbf16>
    %c0_26 = arith.constant 0 : index
    %c0_27 = arith.constant 0 : index
    %34 = vector.load %arg11[%c0_26, %c0_27] : memref<1x64xf32, #tpu.memory_space<vmem>>, vector<1x64xf32>
    %35 = arith.truncf %32 : vector<128x128xf32> to vector<128x128xbf16>
    %cst_28 = arith.constant dense<0.000000e+00> : vector<128x64xf32>
    %36 = tpu.matmul %35, %33, %cst_28 {dimension_numbers = #tpu.dot_dimension_numbers<[1], [0], [0], [1], [0, 0, 1, 1], [], []>} : vector<128x128xbf16>, vector<128x64xbf16>, vector<128x64xf32> -> vector<128x64xf32>
    %37 = vector.broadcast %34 : vector<1x64xf32> to vector<128x64xf32>
    %38 = arith.addf %36, %37 : vector<128x64xf32>
    %cst_29 = arith.constant 0.000000e+00 : f32
    %39 = vector.broadcast %cst_29 : f32 to vector<128x64xf32>
    %40 = arith.maximumf %38, %39 : vector<128x64xf32>
    %c0_30 = arith.constant 0 : index
    %c0_31 = arith.constant 0 : index
    %41 = vector.load %arg12[%c0_30, %c0_31] : memref<64x32xbf16, #tpu.memory_space<vmem>>, vector<64x32xbf16>
    %c0_32 = arith.constant 0 : index
    %c0_33 = arith.constant 0 : index
    %42 = vector.load %arg13[%c0_32, %c0_33] : memref<1x32xf32, #tpu.memory_space<vmem>>, vector<1x32xf32>
    %43 = arith.truncf %40 : vector<128x64xf32> to vector<128x64xbf16>
    %cst_34 = arith.constant dense<0.000000e+00> : vector<128x32xf32>
    %44 = tpu.matmul %43, %41, %cst_34 {dimension_numbers = #tpu.dot_dimension_numbers<[1], [0], [0], [1], [0, 0, 1, 1], [], []>} : vector<128x64xbf16>, vector<64x32xbf16>, vector<128x32xf32> -> vector<128x32xf32>
    %45 = vector.broadcast %42 : vector<1x32xf32> to vector<128x32xf32>
    %46 = arith.addf %44, %45 : vector<128x32xf32>
    %cst_35 = arith.constant 0.000000e+00 : f32
    %47 = vector.broadcast %cst_35 : f32 to vector<128x32xf32>
    %48 = arith.maximumf %46, %47 : vector<128x32xf32>
    %c0_36 = arith.constant 0 : index
    %c0_37 = arith.constant 0 : index
    %49 = vector.load %arg14[%c0_36, %c0_37] : memref<1x32xf32, #tpu.memory_space<vmem>>, vector<1x32xf32>
    %c0_38 = arith.constant 0 : index
    %c0_39 = arith.constant 0 : index
    %50 = vector.load %arg15[%c0_38, %c0_39] : memref<1x1xf32, #tpu.memory_space<vmem>>, vector<1x1xf32>
    %51 = vector.broadcast %49 : vector<1x32xf32> to vector<128x32xf32>
    %52 = arith.mulf %48, %51 : vector<128x32xf32>
    %cst_40 = arith.constant dense<0.000000e+00> : vector<128xf32>
    %53 = vector.multi_reduction <add>, %52, %cst_40 [1] : vector<128x32xf32> to vector<128xf32>
    %54 = vector.shape_cast %53 : vector<128xf32> to vector<128x1xf32>
    %55 = vector.broadcast %50 : vector<1x1xf32> to vector<128x1xf32>
    %56 = arith.addf %54, %55 : vector<128x1xf32>
    %c0_41 = arith.constant 0 : index
    %c0_42 = arith.constant 0 : index
    %57 = vector.load %arg16[%c0_41, %c0_42] : memref<128x1xf32, #tpu.memory_space<vmem>>, vector<128x1xf32>
    tpu.vector_store %arg16[%c0_41, %c0_42], %56 {strides = array<i32>} : memref<128x1xf32, #tpu.memory_space<vmem>>, vector<128x1xf32>,
    return
  }
  func.func @transform_0(%arg0: i32) -> (i32, i32) {
    %c0_i32 = arith.constant 0 : i32
    %c0_i32_0 = arith.constant 0 : i32
    return %arg0, %c0_i32 : i32, i32
  }
  func.func @transform_1(%arg0: i32) -> (i32, i32) {
    %c0_i32 = arith.constant 0 : i32
    %c0_i32_0 = arith.constant 0 : i32
    %c0_i32_1 = arith.constant 0 : i32
    return %c0_i32, %c0_i32_0 : i32, i32
  }
  func.func @transform_2(%arg0: i32) -> (i32, i32) {
    %c0_i32 = arith.constant 0 : i32
    %c0_i32_0 = arith.constant 0 : i32
    %c0_i32_1 = arith.constant 0 : i32
    return %c0_i32, %c0_i32_0 : i32, i32
  }
  func.func @transform_3(%arg0: i32) -> (i32, i32) {
    %c0_i32 = arith.constant 0 : i32
    %c0_i32_0 = arith.constant 0 : i32
    %c0_i32_1 = arith.constant 0 : i32
    return %c0_i32, %c0_i32_0 : i32, i32
  }
  func.func @transform_4(%arg0: i32) -> (i32, i32) {
    %c0_i32 = arith.constant 0 : i32
    %c0_i32_0 = arith.constant 0 : i32
    %c0_i32_1 = arith.constant 0 : i32
    return %c0_i32, %c0_i32_0 : i32, i32
  }
  func.func @transform_5(%arg0: i32) -> (i32, i32) {
    %c0_i32 = arith.constant 0 : i32
    %c0_i32_0 = arith.constant 0 : i32
    %c0_i32_1 = arith.constant 0 : i32
    return %c0_i32, %c0_i32_0 : i32, i32
  }
  func.func @transform_6(%arg0: i32) -> (i32, i32) {
    %c0_i32 = arith.constant 0 : i32
    %c0_i32_0 = arith.constant 0 : i32
    %c0_i32_1 = arith.constant 0 : i32
    return %c0_i32, %c0_i32_0 : i32, i32
  }
  func.func @transform_7(%arg0: i32) -> (i32, i32) {
    %c0_i32 = arith.constant 0 : i32
    %c0_i32_0 = arith.constant 0 : i32
    %c0_i32_1 = arith.constant 0 : i32
    return %c0_i32, %c0_i32_0 : i32, i32
  }
  func.func @transform_8(%arg0: i32) -> (i32, i32) {
    %c0_i32 = arith.constant 0 : i32
    %c0_i32_0 = arith.constant 0 : i32
    %c0_i32_1 = arith.constant 0 : i32
    return %c0_i32, %c0_i32_0 : i32, i32
  }
  func.func @transform_9(%arg0: i32) -> (i32, i32) {
    %c0_i32 = arith.constant 0 : i32
    %c0_i32_0 = arith.constant 0 : i32
    %c0_i32_1 = arith.constant 0 : i32
    return %c0_i32, %c0_i32_0 : i32, i32
  }
  func.func @transform_10(%arg0: i32) -> (i32, i32) {
    %c0_i32 = arith.constant 0 : i32
    %c0_i32_0 = arith.constant 0 : i32
    %c0_i32_1 = arith.constant 0 : i32
    return %c0_i32, %c0_i32_0 : i32, i32
  }
  func.func @transform_11(%arg0: i32) -> (i32, i32) {
    %c0_i32 = arith.constant 0 : i32
    %c0_i32_0 = arith.constant 0 : i32
    %c0_i32_1 = arith.constant 0 : i32
    return %c0_i32, %c0_i32_0 : i32, i32
  }
  func.func @transform_12(%arg0: i32) -> (i32, i32) {
    %c0_i32 = arith.constant 0 : i32
    %c0_i32_0 = arith.constant 0 : i32
    %c0_i32_1 = arith.constant 0 : i32
    return %c0_i32, %c0_i32_0 : i32, i32
  }
  func.func @transform_13(%arg0: i32) -> (i32, i32) {
    %c0_i32 = arith.constant 0 : i32
    %c0_i32_0 = arith.constant 0 : i32
    %c0_i32_1 = arith.constant 0 : i32
    return %c0_i32, %c0_i32_0 : i32, i32
  }
  func.func @transform_14(%arg0: i32) -> (i32, i32) {
    %c0_i32 = arith.constant 0 : i32
    %c0_i32_0 = arith.constant 0 : i32
    %c0_i32_1 = arith.constant 0 : i32
    return %c0_i32, %c0_i32_0 : i32, i32
  }
  func.func @transform_15(%arg0: i32) -> (i32, i32) {
    %c0_i32 = arith.constant 0 : i32
    %c0_i32_0 = arith.constant 0 : i32
    return %arg0, %c0_i32 : i32, i32
  }
}

</mosaic_0001>

<llo_original>
// kernel: tpu_custom_call.1
$region0: #{tpu_custom_call.1}
  #allocation0 [shape = 'u32[]', space=smem, size = 0x4, offset = 0x4, fixed_abs, tag = 'smem constant byte address 0x4 - core index']
  #allocation1 [shape = 'u32[144,128]{1,0:T(1,128)}', space=vmem, size = 0x12000, scoped, tag = 'internal scratch']
  #allocation2 [shape = 'f32[1,1]{1,0:T(1,128)S(1)}', space=vmem, size = 0x200, scoped, tag = 'scoped memory for tpu_custom_call.1']
  %s0 = inlined_call_operand.vmem [shape: f32[256,8], index: 0, kind: input, shape index: {}]
  %s1 = inlined_call_operand.vmem [shape: bf16[8,64], index: 1, kind: input, shape index: {}]
  %s2 = inlined_call_operand.vmem [shape: f32[1,64], index: 2, kind: input, shape index: {}]
  %s3 = inlined_call_operand.vmem [shape: bf16[64,128], index: 3, kind: input, shape index: {}]
  %s4 = inlined_call_operand.vmem [shape: f32[1,128], index: 4, kind: input, shape index: {}]
  %s5 = inlined_call_operand.vmem [shape: bf16[128,256], index: 5, kind: input, shape index: {}]
  %s6 = inlined_call_operand.vmem [shape: f32[1,256], index: 6, kind: input, shape index: {}]
  %s7 = inlined_call_operand.vmem [shape: bf16[256,128], index: 7, kind: input, shape index: {}]
  %s8 = inlined_call_operand.vmem [shape: f32[1,128], index: 8, kind: input, shape index: {}]
  %s9 = inlined_call_operand.vmem [shape: bf16[128,64], index: 9, kind: input, shape index: {}]
  %s10 = inlined_call_operand.vmem [shape: f32[1,64], index: 10, kind: input, shape index: {}]
  %s11 = inlined_call_operand.vmem [shape: bf16[64,32], index: 11, kind: input, shape index: {}]
  %s12 = inlined_call_operand.vmem [shape: f32[1,32], index: 12, kind: input, shape index: {}]
  %s13 = inlined_call_operand.vmem [shape: f32[1,32], index: 13, kind: input, shape index: {}]
  %s14 = inlined_call_operand.<no memory space> [shape: f32[1,1], index: 14, kind: input, shape index: {}]
  %s15 = inlined_call_operand.vmem [shape: f32[256,1], index: 15, kind: output, shape index: {}]
  %s16 = sld [smem:[#allocation0]]
  $region93: #{tpu_custom_call.1} parent=0
    _
  %s18 = ssub.s32 1, %s16
  %s19 = scalar_select 0, %s18, %s16
  %v20 = vstv %s14
  %21 = vst [vmem:[#allocation2] sm:$0x1] %v20
  loop: start=0, step=1, limit=4
  $region2: #{tpu_custom_call.1} parent=0 // loop_pre_header
    _
  $region3: #{tpu_custom_call.1} parent=0 // loop_header
    %s23 = sphi 0, %s27
    %p24 = scmp.ge.s32.totalorder %s23, 4
    %s33 = sphi 0, %s35
    %s36 = sphi 0, %s33
    %s37 = sphi 0, %s36
    %s53 = sphi 0, %s37
    %s57 = sphi 0, %s57
    %s59 = sphi 0, %s57
    %s60 = sphi 0, %s59
    %s74 = sphi 0, %s60
    %s78 = sphi 0, %s78
    %s80 = sphi 0, %s78
    %s81 = sphi 0, %s80
    %s95 = sphi 0, %s81
    %s99 = sphi 0, %s99
    %s101 = sphi 0, %s99
    %s102 = sphi 0, %s101
    %s116 = sphi 0, %s102
    %s120 = sphi 0, %s120
    %s122 = sphi 0, %s120
    %s123 = sphi 0, %s122
    %s137 = sphi 0, %s123
    %s141 = sphi 0, %s141
    %s143 = sphi 0, %s141
    %s144 = sphi 0, %s143
    %s158 = sphi 0, %s144
    %s162 = sphi 0, %s162
    %s164 = sphi 0, %s162
    %s165 = sphi 0, %s164
    %s179 = sphi 0, %s165
    %s183 = sphi 0, %s183
    %s185 = sphi 0, %s183
    %s186 = sphi 0, %s185
    %s200 = sphi 0, %s186
    %s204 = sphi 0, %s204
    %s206 = sphi 0, %s204
    %s207 = sphi 0, %s206
    %s221 = sphi 0, %s207
    %s225 = sphi 0, %s225
    %s227 = sphi 0, %s225
    %s228 = sphi 0, %s227
    %s242 = sphi 0, %s228
    %s246 = sphi 0, %s246
    %s248 = sphi 0, %s246
    %s249 = sphi 0, %s248
    %s263 = sphi 0, %s249
    %s267 = sphi 0, %s267
    %s269 = sphi 0, %s267
    %s270 = sphi 0, %s269
    %s284 = sphi 0, %s270
    %s288 = sphi 0, %s288
    %s290 = sphi 0, %s288
    %s291 = sphi 0, %s290
    %s305 = sphi 0, %s291
    %s309 = sphi 0, %s309
    %s311 = sphi 0, %s309
    %s312 = sphi 0, %s311
    %s326 = sphi 0, %s312
    %s330 = sphi 0, %s330
    %s332 = sphi 0, %s330
    %s333 = sphi 0, %s332
    %s347 = sphi 0, %s333
    %s353 = sphi 0, %s355
    %s356 = sphi 0, %s353
    %s357 = sphi 0, %s356
    %s373 = sphi 0, %s357
  $region4: #{tpu_custom_call.1} parent=0 // loop_header_branch
    %26 = sbr.rel (%p24) target = $region8
  $region5: #{tpu_custom_call.1} parent=0 // loop_body
    %s28 = ssub.s32 %s23, 1
    %s29 = ssub.s32 %s23, 2
    %s30 = sadd.s32 %s23, 1
    %s31 = ssub.s32 %s23, %s30
    %p32 = scmp.eq.s32.totalorder %s31, 0
    %s34 = sadd.s32 %s33, 1
    %s35 = scalar_select %p32, %s33, %s34
    %p38 = pneg %p32
    %p39 = scmp.eq.s32.totalorder %s23, 1
    %p40 = por %p38, %p39
    %p41 = scmp.ne.s32.totalorder %s33, %s36
    %p42 = scmp.eq.s32.totalorder %s23, 0
    %p43 = por %p41, %p42
    %p44 = scmp.ne.s32.totalorder %s33, %s36
    %p45 = scmp.eq.s32.totalorder %s28, 1
    %p46 = por %p44, %p45
    %p47 = scmp.ne.s32.totalorder %s36, %s37
    %p48 = scmp.eq.s32.totalorder %s28, 0
    %p49 = por %p47, %p48
    %p50 = scmp.ne.s32.totalorder %s36, %s37
    %p51 = scmp.eq.s32.totalorder %s29, 1
    %p52 = por %p50, %p51
    %p54 = scmp.ne.s32.totalorder %s37, %s53
    %p55 = scmp.eq.s32.totalorder %s29, 0
    %p56 = por %p54, %p55
    %s58 = sadd.s32 %s57, 1
    %p61 = scmp.eq.s32.totalorder %s23, 1
    %p62 = scmp.ne.s32.totalorder %s57, %s59
    %p63 = scmp.eq.s32.totalorder %s23, 0
    %p64 = por %p62, %p63
    %p65 = scmp.ne.s32.totalorder %s57, %s59
    %p66 = scmp.eq.s32.totalorder %s28, 1
    %p67 = por %p65, %p66
    %p68 = scmp.ne.s32.totalorder %s59, %s60
    %p69 = scmp.eq.s32.totalorder %s28, 0
    %p70 = por %p68, %p69
    %p71 = scmp.ne.s32.totalorder %s59, %s60
    %p72 = scmp.eq.s32.totalorder %s29, 1
    %p73 = por %p71, %p72
    %p75 = scmp.ne.s32.totalorder %s60, %s74
    %p76 = scmp.eq.s32.totalorder %s29, 0
    %p77 = por %p75, %p76
    %s79 = sadd.s32 %s78, 1
    %p82 = scmp.eq.s32.totalorder %s23, 1
    %p83 = scmp.ne.s32.totalorder %s78, %s80
    %p84 = scmp.eq.s32.totalorder %s23, 0
    %p85 = por %p83, %p84
    %p86 = scmp.ne.s32.totalorder %s78, %s80
    %p87 = scmp.eq.s32.totalorder %s28, 1
    %p88 = por %p86, %p87
    %p89 = scmp.ne.s32.totalorder %s80, %s81
    %p90 = scmp.eq.s32.totalorder %s28, 0
    %p91 = por %p89, %p90
    %p92 = scmp.ne.s32.totalorder %s80, %s81
    %p93 = scmp.eq.s32.totalorder %s29, 1
    %p94 = por %p92, %p93
    %p96 = scmp.ne.s32.totalorder %s81, %s95
    %p97 = scmp.eq.s32.totalorder %s29, 0
    %p98 = por %p96, %p97
    %s100 = sadd.s32 %s99, 1
    %p103 = scmp.eq.s32.totalorder %s23, 1
    %p104 = scmp.ne.s32.totalorder %s99, %s101
    %p105 = scmp.eq.s32.totalorder %s23, 0
    %p106 = por %p104, %p105
    %p107 = scmp.ne.s32.totalorder %s99, %s101
    %p108 = scmp.eq.s32.totalorder %s28, 1
    %p109 = por %p107, %p108
    %p110 = scmp.ne.s32.totalorder %s101, %s102
    %p111 = scmp.eq.s32.totalorder %s28, 0
    %p112 = por %p110, %p111
    %p113 = scmp.ne.s32.totalorder %s101, %s102
    %p114 = scmp.eq.s32.totalorder %s29, 1
    %p115 = por %p113, %p114
    %p117 = scmp.ne.s32.totalorder %s102, %s116
    %p118 = scmp.eq.s32.totalorder %s29, 0
    %p119 = por %p117, %p118
    %s121 = sadd.s32 %s120, 1
    %p124 = scmp.eq.s32.totalorder %s23, 1
    %p125 = scmp.ne.s32.totalorder %s120, %s122
    %p126 = scmp.eq.s32.totalorder %s23, 0
    %p127 = por %p125, %p126
    %p128 = scmp.ne.s32.totalorder %s120, %s122
    %p129 = scmp.eq.s32.totalorder %s28, 1
    %p130 = por %p128, %p129
    %p131 = scmp.ne.s32.totalorder %s122, %s123
    %p132 = scmp.eq.s32.totalorder %s28, 0
    %p133 = por %p131, %p132
    %p134 = scmp.ne.s32.totalorder %s122, %s123
    %p135 = scmp.eq.s32.totalorder %s29, 1
    %p136 = por %p134, %p135
    %p138 = scmp.ne.s32.totalorder %s123, %s137
    %p139 = scmp.eq.s32.totalorder %s29, 0
    %p140 = por %p138, %p139
    %s142 = sadd.s32 %s141, 1
    %p145 = scmp.eq.s32.totalorder %s23, 1
    %p146 = scmp.ne.s32.totalorder %s141, %s143
    %p147 = scmp.eq.s32.totalorder %s23, 0
    %p148 = por %p146, %p147
    %p149 = scmp.ne.s32.totalorder %s141, %s143
    %p150 = scmp.eq.s32.totalorder %s28, 1
    %p151 = por %p149, %p150
    %p152 = scmp.ne.s32.totalorder %s143, %s144
    %p153 = scmp.eq.s32.totalorder %s28, 0
    %p154 = por %p152, %p153
    %p155 = scmp.ne.s32.totalorder %s143, %s144
    %p156 = scmp.eq.s32.totalorder %s29, 1
    %p157 = por %p155, %p156
    %p159 = scmp.ne.s32.totalorder %s144, %s158
    %p160 = scmp.eq.s32.totalorder %s29, 0
    %p161 = por %p159, %p160
    %s163 = sadd.s32 %s162, 1
    %p166 = scmp.eq.s32.totalorder %s23, 1
    %p167 = scmp.ne.s32.totalorder %s162, %s164
    %p168 = scmp.eq.s32.totalorder %s23, 0
    %p169 = por %p167, %p168
    %p170 = scmp.ne.s32.totalorder %s162, %s164
    %p171 = scmp.eq.s32.totalorder %s28, 1
    %p172 = por %p170, %p171
    %p173 = scmp.ne.s32.totalorder %s164, %s165
    %p174 = scmp.eq.s32.totalorder %s28, 0
    %p175 = por %p173, %p174
    %p176 = scmp.ne.s32.totalorder %s164, %s165
    %p177 = scmp.eq.s32.totalorder %s29, 1
    %p178 = por %p176, %p177
    %p180 = scmp.ne.s32.totalorder %s165, %s179
    %p181 = scmp.eq.s32.totalorder %s29, 0
    %p182 = por %p180, %p181
    %s184 = sadd.s32 %s183, 1
    %p187 = scmp.eq.s32.totalorder %s23, 1
    %p188 = scmp.ne.s32.totalorder %s183, %s185
    %p189 = scmp.eq.s32.totalorder %s23, 0
    %p190 = por %p188, %p189
    %p191 = scmp.ne.s32.totalorder %s183, %s185
    %p192 = scmp.eq.s32.totalorder %s28, 1
    %p193 = por %p191, %p192
    %p194 = scmp.ne.s32.totalorder %s185, %s186
    %p195 = scmp.eq.s32.totalorder %s28, 0
    %p196 = por %p194, %p195
    %p197 = scmp.ne.s32.totalorder %s185, %s186
    %p198 = scmp.eq.s32.totalorder %s29, 1
    %p199 = por %p197, %p198
    %p201 = scmp.ne.s32.totalorder %s186, %s200
    %p202 = scmp.eq.s32.totalorder %s29, 0
    %p203 = por %p201, %p202
    %s205 = sadd.s32 %s204, 1
    %p208 = scmp.eq.s32.totalorder %s23, 1
    %p209 = scmp.ne.s32.totalorder %s204, %s206
    %p210 = scmp.eq.s32.totalorder %s23, 0
    %p211 = por %p209, %p210
    %p212 = scmp.ne.s32.totalorder %s204, %s206
    %p213 = scmp.eq.s32.totalorder %s28, 1
    %p214 = por %p212, %p213
    %p215 = scmp.ne.s32.totalorder %s206, %s207
    %p216 = scmp.eq.s32.totalorder %s28, 0
    %p217 = por %p215, %p216
    %p218 = scmp.ne.s32.totalorder %s206, %s207
    %p219 = scmp.eq.s32.totalorder %s29, 1
    %p220 = por %p218, %p219
    %p222 = scmp.ne.s32.totalorder %s207, %s221
    %p223 = scmp.eq.s32.totalorder %s29, 0
    %p224 = por %p222, %p223
    %s226 = sadd.s32 %s225, 1
    %p229 = scmp.eq.s32.totalorder %s23, 1
    %p230 = scmp.ne.s32.totalorder %s225, %s227
    %p231 = scmp.eq.s32.totalorder %s23, 0
    %p232 = por %p230, %p231
    %p233 = scmp.ne.s32.totalorder %s225, %s227
    %p234 = scmp.eq.s32.totalorder %s28, 1
    %p235 = por %p233, %p234
    %p236 = scmp.ne.s32.totalorder %s227, %s228
    %p237 = scmp.eq.s32.totalorder %s28, 0
    %p238 = por %p236, %p237
    %p239 = scmp.ne.s32.totalorder %s227, %s228
    %p240 = scmp.eq.s32.totalorder %s29, 1
    %p241 = por %p239, %p240
    %p243 = scmp.ne.s32.totalorder %s228, %s242
    %p244 = scmp.eq.s32.totalorder %s29, 0
    %p245 = por %p243, %p244
    %s247 = sadd.s32 %s246, 1
    %p250 = scmp.eq.s32.totalorder %s23, 1
    %p251 = scmp.ne.s32.totalorder %s246, %s248
    %p252 = scmp.eq.s32.totalorder %s23, 0
    %p253 = por %p251, %p252
    %p254 = scmp.ne.s32.totalorder %s246, %s248
    %p255 = scmp.eq.s32.totalorder %s28, 1
    %p256 = por %p254, %p255
    %p257 = scmp.ne.s32.totalorder %s248, %s249
    %p258 = scmp.eq.s32.totalorder %s28, 0
    %p259 = por %p257, %p258
    %p260 = scmp.ne.s32.totalorder %s248, %s249
    %p261 = scmp.eq.s32.totalorder %s29, 1
    %p262 = por %p260, %p261
    %p264 = scmp.ne.s32.totalorder %s249, %s263
    %p265 = scmp.eq.s32.totalorder %s29, 0
    %p266 = por %p264, %p265
    %s268 = sadd.s32 %s267, 1
    %p271 = scmp.eq.s32.totalorder %s23, 1
    %p272 = scmp.ne.s32.totalorder %s267, %s269
    %p273 = scmp.eq.s32.totalorder %s23, 0
    %p274 = por %p272, %p273
    %p275 = scmp.ne.s32.totalorder %s267, %s269
    %p276 = scmp.eq.s32.totalorder %s28, 1
    %p277 = por %p275, %p276
    %p278 = scmp.ne.s32.totalorder %s269, %s270
    %p279 = scmp.eq.s32.totalorder %s28, 0
    %p280 = por %p278, %p279
    %p281 = scmp.ne.s32.totalorder %s269, %s270
    %p282 = scmp.eq.s32.totalorder %s29, 1
    %p283 = por %p281, %p282
    %p285 = scmp.ne.s32.totalorder %s270, %s284
    %p286 = scmp.eq.s32.totalorder %s29, 0
    %p287 = por %p285, %p286
    %s289 = sadd.s32 %s288, 1
    %p292 = scmp.eq.s32.totalorder %s23, 1
    %p293 = scmp.ne.s32.totalorder %s288, %s290
    %p294 = scmp.eq.s32.totalorder %s23, 0
    %p295 = por %p293, %p294
    %p296 = scmp.ne.s32.totalorder %s288, %s290
    %p297 = scmp.eq.s32.totalorder %s28, 1
    %p298 = por %p296, %p297
    %p299 = scmp.ne.s32.totalorder %s290, %s291
    %p300 = scmp.eq.s32.totalorder %s28, 0
    %p301 = por %p299, %p300
    %p302 = scmp.ne.s32.totalorder %s290, %s291
    %p303 = scmp.eq.s32.totalorder %s29, 1
    %p304 = por %p302, %p303
    %p306 = scmp.ne.s32.totalorder %s291, %s305
    %p307 = scmp.eq.s32.totalorder %s29, 0
    %p308 = por %p306, %p307
    %s310 = sadd.s32 %s309, 1
    %p313 = scmp.eq.s32.totalorder %s23, 1
    %p314 = scmp.ne.s32.totalorder %s309, %s311
    %p315 = scmp.eq.s32.totalorder %s23, 0
    %p316 = por %p314, %p315
    %p317 = scmp.ne.s32.totalorder %s309, %s311
    %p318 = scmp.eq.s32.totalorder %s28, 1
    %p319 = por %p317, %p318
    %p320 = scmp.ne.s32.totalorder %s311, %s312
    %p321 = scmp.eq.s32.totalorder %s28, 0
    %p322 = por %p320, %p321
    %p323 = scmp.ne.s32.totalorder %s311, %s312
    %p324 = scmp.eq.s32.totalorder %s29, 1
    %p325 = por %p323, %p324
    %p327 = scmp.ne.s32.totalorder %s312, %s326
    %p328 = scmp.eq.s32.totalorder %s29, 0
    %p329 = por %p327, %p328
    %s331 = sadd.s32 %s330, 1
    %p334 = scmp.eq.s32.totalorder %s23, 1
    %p335 = scmp.ne.s32.totalorder %s330, %s332
    %p336 = scmp.eq.s32.totalorder %s23, 0
    %p337 = por %p335, %p336
    %p338 = scmp.ne.s32.totalorder %s330, %s332
    %p339 = scmp.eq.s32.totalorder %s28, 1
    %p340 = por %p338, %p339
    %p341 = scmp.ne.s32.totalorder %s332, %s333
    %p342 = scmp.eq.s32.totalorder %s28, 0
    %p343 = por %p341, %p342
    %p344 = scmp.ne.s32.totalorder %s332, %s333
    %p345 = scmp.eq.s32.totalorder %s29, 1
    %p346 = por %p344, %p345
    %p348 = scmp.ne.s32.totalorder %s333, %s347
    %p349 = scmp.eq.s32.totalorder %s29, 0
    %p350 = por %p348, %p349
    %s351 = ssub.s32 %s23, %s30
    %p352 = scmp.eq.s32.totalorder %s351, 0
    %s354 = sadd.s32 %s353, 1
    %s355 = scalar_select %p352, %s353, %s354
    %p358 = pneg %p352
    %p359 = scmp.eq.s32.totalorder %s23, 1
    %p360 = por %p358, %p359
    %p361 = scmp.ne.s32.totalorder %s353, %s356
    %p362 = scmp.eq.s32.totalorder %s23, 0
    %p363 = por %p361, %p362
    %p364 = scmp.ne.s32.totalorder %s353, %s356
    %p365 = scmp.eq.s32.totalorder %s28, 1
    %p366 = por %p364, %p365
    %p367 = scmp.ne.s32.totalorder %s356, %s357
    %p368 = scmp.eq.s32.totalorder %s28, 0
    %p369 = por %p367, %p368
    %p370 = scmp.ne.s32.totalorder %s356, %s357
    %p371 = scmp.eq.s32.totalorder %s29, 1
    %p372 = por %p370, %p371
    %p374 = scmp.ne.s32.totalorder %s357, %s373
    %p375 = scmp.eq.s32.totalorder %s29, 0
    %p376 = por %p374, %p375
    %p377 = scmp.le.s32.totalorder 1, %s23
    %p378 = scmp.lt.s32.totalorder %s23, 3
    %p379 = pnand %p377, %p378
    %p380 = pneg %p379
    // Predicated region
    $region9: #{tpu_custom_call.1} parent=5 // pred_check
      _
    $region10: #{tpu_custom_call.1} parent=5 // pred_check_branch
      %382 = sbr.rel (%p379) target = $region12
    $region11: #{tpu_custom_call.1} parent=5 // pred_region
      %s383 = ssub.s32 %s23, 1
      // Predicated region
      $region13: #{tpu_custom_call.1} parent=11 // pred_check
        %p384 = pneg %p70
      $region14: #{tpu_custom_call.1} parent=11 // pred_check_branch
        %386 = sbr.rel (%p384) target = $region16
      $region15: #{tpu_custom_call.1} parent=11 // pred_region
        _
      $region16: #{tpu_custom_call.1} parent=11 // pred_fallthru
        _
      // Predicated region
      $region17: #{tpu_custom_call.1} parent=11 // pred_check
        %p387 = pneg %p91
      $region18: #{tpu_custom_call.1} parent=11 // pred_check_branch
        %389 = sbr.rel (%p387) target = $region20
      $region19: #{tpu_custom_call.1} parent=11 // pred_region
        _
      $region20: #{tpu_custom_call.1} parent=11 // pred_fallthru
        _
      // Predicated region
      $region21: #{tpu_custom_call.1} parent=11 // pred_check
        %p390 = pneg %p112
      $region22: #{tpu_custom_call.1} parent=11 // pred_check_branch
        %392 = sbr.rel (%p390) target = $region24
      $region23: #{tpu_custom_call.1} parent=11 // pred_region
        _
      $region24: #{tpu_custom_call.1} parent=11 // pred_fallthru
        _
      // Predicated region
      $region25: #{tpu_custom_call.1} parent=11 // pred_check
        %p393 = pneg %p133
      $region26: #{tpu_custom_call.1} parent=11 // pred_check_branch
        %395 = sbr.rel (%p393) target = $region28
      $region27: #{tpu_custom_call.1} parent=11 // pred_region
        _
      $region28: #{tpu_custom_call.1} parent=11 // pred_fallthru
        _
      // Predicated region
      $region29: #{tpu_custom_call.1} parent=11 // pred_check
        %p396 = pneg %p154
      $region30: #{tpu_custom_call.1} parent=11 // pred_check_branch
        %398 = sbr.rel (%p396) target = $region32
      $region31: #{tpu_custom_call.1} parent=11 // pred_region
        _
      $region32: #{tpu_custom_call.1} parent=11 // pred_fallthru
        _
      // Predicated region
      $region33: #{tpu_custom_call.1} parent=11 // pred_check
        %p399 = pneg %p175
      $region34: #{tpu_custom_call.1} parent=11 // pred_check_branch
        %401 = sbr.rel (%p399) target = $region36
      $region35: #{tpu_custom_call.1} parent=11 // pred_region
        _
      $region36: #{tpu_custom_call.1} parent=11 // pred_fallthru
        _
      // Predicated region
      $region37: #{tpu_custom_call.1} parent=11 // pred_check
        %p402 = pneg %p196
      $region38: #{tpu_custom_call.1} parent=11 // pred_check_branch
        %404 = sbr.rel (%p402) target = $region40
      $region39: #{tpu_custom_call.1} parent=11 // pred_region
        _
      $region40: #{tpu_custom_call.1} parent=11 // pred_fallthru
        _
      // Predicated region
      $region41: #{tpu_custom_call.1} parent=11 // pred_check
        %p405 = pneg %p217
      $region42: #{tpu_custom_call.1} parent=11 // pred_check_branch
        %407 = sbr.rel (%p405) target = $region44
      $region43: #{tpu_custom_call.1} parent=11 // pred_region
        _
      $region44: #{tpu_custom_call.1} parent=11 // pred_fallthru
        _
      // Predicated region
      $region45: #{tpu_custom_call.1} parent=11 // pred_check
        %p408 = pneg %p238
      $region46: #{tpu_custom_call.1} parent=11 // pred_check_branch
        %410 = sbr.rel (%p408) target = $region48
      $region47: #{tpu_custom_call.1} parent=11 // pred_region
        _
      $region48: #{tpu_custom_call.1} parent=11 // pred_fallthru
        _
      // Predicated region
      $region49: #{tpu_custom_call.1} parent=11 // pred_check
        %p411 = pneg %p259
      $region50: #{tpu_custom_call.1} parent=11 // pred_check_branch
        %413 = sbr.rel (%p411) target = $region52
      $region51: #{tpu_custom_call.1} parent=11 // pred_region
        _
      $region52: #{tpu_custom_call.1} parent=11 // pred_fallthru
        _
      // Predicated region
      $region53: #{tpu_custom_call.1} parent=11 // pred_check
        %p414 = pneg %p280
      $region54: #{tpu_custom_call.1} parent=11 // pred_check_branch
        %416 = sbr.rel (%p414) target = $region56
      $region55: #{tpu_custom_call.1} parent=11 // pred_region
        _
      $region56: #{tpu_custom_call.1} parent=11 // pred_fallthru
        _
      // Predicated region
      $region57: #{tpu_custom_call.1} parent=11 // pred_check
        %p417 = pneg %p301
      $region58: #{tpu_custom_call.1} parent=11 // pred_check_branch
        %419 = sbr.rel (%p417) target = $region60
      $region59: #{tpu_custom_call.1} parent=11 // pred_region
        _
      $region60: #{tpu_custom_call.1} parent=11 // pred_fallthru
        _
      // Predicated region
      $region61: #{tpu_custom_call.1} parent=11 // pred_check
        %p420 = pneg %p322
      $region62: #{tpu_custom_call.1} parent=11 // pred_check_branch
        %422 = sbr.rel (%p420) target = $region64
      $region63: #{tpu_custom_call.1} parent=11 // pred_region
        _
      $region64: #{tpu_custom_call.1} parent=11 // pred_fallthru
        _
      // Predicated region
      $region65: #{tpu_custom_call.1} parent=11 // pred_check
        %p423 = pneg %p343
      $region66: #{tpu_custom_call.1} parent=11 // pred_check_branch
        %425 = sbr.rel (%p423) target = $region68
      $region67: #{tpu_custom_call.1} parent=11 // pred_region
        _
      $region68: #{tpu_custom_call.1} parent=11 // pred_fallthru
        _
    $region12: #{tpu_custom_call.1} parent=5 // pred_fallthru
      _
    %p426 = scmp.lt.s32.totalorder %s23, 2
    // Predicated region
    $region69: #{tpu_custom_call.1} parent=5 // pred_check
      %p427 = pneg %p426
    $region70: #{tpu_custom_call.1} parent=5 // pred_check_branch
      %429 = sbr.rel (%p427) target = $region72
    $region71: #{tpu_custom_call.1} parent=5 // pred_region
      // Predicated region
      $region73: #{tpu_custom_call.1} parent=71 // pred_check
        %p430 = pneg %p43
      $region74: #{tpu_custom_call.1} parent=71 // pred_check_branch
        %432 = sbr.rel (%p430) target = $region76
      $region75: #{tpu_custom_call.1} parent=71 // pred_region
        %s433 = smul.u32 16, %s23
        %p434 = scmp.lt.s32.totalorder %s433, 31
        %s435 = scalar_select %p434, %s433, 31
        %s436 = smul.addr %s435, 8
        %s437 = scalar_lea.vmem %s0, %s436
        %s438 = smul.u32 16, %s23
      $region76: #{tpu_custom_call.1} parent=71 // pred_fallthru
        _
    $region72: #{tpu_custom_call.1} parent=5 // pred_fallthru
      _
    %p439 = scmp.le.s32.totalorder 1, %s23
    %p440 = scmp.lt.s32.totalorder %s23, 3
    %p441 = pnand %p439, %p440
    %p442 = pneg %p441
    // Predicated region
    $region77: #{tpu_custom_call.1} parent=5 // pred_check
      _
    $region78: #{tpu_custom_call.1} parent=5 // pred_check_branch
      %444 = sbr.rel (%p441) target = $region80
    $region79: #{tpu_custom_call.1} parent=5 // pred_region
      %s445 = ssub.s32 %s23, 1
      %s446 = smul.u32 16, %s28
      %p447 = scmp.lt.s32.totalorder %s446, 31
      %s448 = scalar_select %p447, %s446, 31
      %s449 = smul.addr %s448, 8
      %s450 = scalar_lea.vmem %s0, %s449
      %p451 = pneg %p49
      %p452 = pneg %p46
      %p453 = pneg %p70
      %p454 = pneg %p67
      %p455 = pneg %p91
      %p456 = pneg %p88
      %p457 = pneg %p112
      %p458 = pneg %p109
      %p459 = pneg %p133
      %p460 = pneg %p130
      %p461 = pneg %p154
      %p462 = pneg %p151
      %p463 = pneg %p175
      %p464 = pneg %p172
      %p465 = pneg %p196
      %p466 = pneg %p193
      %p467 = pneg %p217
      %p468 = pneg %p214
      %p469 = pneg %p238
      %p470 = pneg %p235
      %p471 = pneg %p259
      %p472 = pneg %p256
      %p473 = pneg %p280
      %p474 = pneg %p277
      %p475 = pneg %p301
      %p476 = pneg %p298
      %p477 = pneg %p322
      %p478 = pneg %p319
      %p479 = pneg %p343
      %p480 = pneg %p340
      %p481 = pneg %p369
      %p482 = pneg %p366
      %s483 = smul.u32 16, %s28
      %p484 = scmp.lt.s32.totalorder %s483, 31
      %s485 = scalar_select %p484, %s483, 31
      %s486 = smul.addr %s485, 8
      %s487 = scalar_lea.vmem %s15, %s486
      %s488 = smul.u32 16, %s28
      %p489 = scmp.lt.s32.totalorder %s488, 31
      %s490 = scalar_select %p489, %s488, 31
      %s491 = smul.addr %s490, 8
      %s492 = scalar_lea.vmem %s0, %s491
      %s493 = smul.u32 16, %s28
      %s494 = smul.u32 16, %s28
      %p495 = scmp.lt.s32.totalorder %s494, 31
      %s496 = scalar_select %p495, %s494, 31
      %s497 = smul.addr %s496, 8
      %s498 = scalar_lea.vmem %s15, %s497
      %s499 = smul.u32 16, %s28
      %v501 = vld [vmem:[%s492] sm:$0xff]
      %v502 = vld [vmem:[%s492 + $0x8] sm:$0xff]
      %v503 = vld [vmem:[%s492 + $0x10] sm:$0xff]
      %v504 = vld [vmem:[%s492 + $0x18] sm:$0xff]
      %v505 = vld [vmem:[%s492 + $0x20] sm:$0xff]
      %v506 = vld [vmem:[%s492 + $0x28] sm:$0xff]
      %v507 = vld [vmem:[%s492 + $0x30] sm:$0xff]
      %v508 = vld [vmem:[%s492 + $0x38] sm:$0xff]
      %v509 = vld [vmem:[%s492 + $0x40] sm:$0xff]
      %v510 = vld [vmem:[%s492 + $0x48] sm:$0xff]
      %v511 = vld [vmem:[%s492 + $0x50] sm:$0xff]
      %v512 = vld [vmem:[%s492 + $0x58] sm:$0xff]
      %v513 = vld [vmem:[%s492 + $0x60] sm:$0xff]
      %v514 = vld [vmem:[%s492 + $0x68] sm:$0xff]
      %v515 = vld [vmem:[%s492 + $0x70] sm:$0xff]
      %v516 = vld [vmem:[%s492 + $0x78] sm:$0xff]
      %v517 = vld [vmem:[%s1] sm:$0xf]
      %v518 = vld [vmem:[%s2] sm:$0x1]
      %v519 = vpack.c.bf16 %v502, %v501
      %v520 = vpack.c.bf16 %v504, %v503
      %v521 = vpack.c.bf16 %v506, %v505
      %v522 = vpack.c.bf16 %v508, %v507
      %v523 = vpack.c.bf16 %v510, %v509
      %v524 = vpack.c.bf16 %v512, %v511
      %v525 = vpack.c.bf16 %v514, %v513
      %v526 = vpack.c.bf16 %v516, %v515
      %v528 = vlaneseq
      %v529 = vshrl.u32 %v528, 7
      %v530 = vsub.s32 0, %v529
      %v531 = vrot.slane %v518, %v530
      %vm533 = vcmask 64512
      %v535 = vsel %vm533, %v519, 0
      %v538 = vsel %vm533, %v520, 0
      %v541 = vsel %vm533, %v521, 0
      %v544 = vsel %vm533, %v522, 0
      %v547 = vsel %vm533, %v523, 0
      %v550 = vsel %vm533, %v524, 0
      %v553 = vsel %vm533, %v525, 0
      %v556 = vsel %vm533, %v526, 0
      %vm558 = vcmask 1043456
      %v560 = vsel %vm558, %v517, 0
      %562 = vmatprep.subr.bf16.mxu0 0
      %563 = vmatpush1.bf16.msra.mxu0 0
      %564 = vmatprep.subr.bf16.mxu0 0
      %565 = vmatpush1.bf16.msra.mxu0 0
      %566 = vmatprep.subr.bf16.mxu0 0
      %567 = vmatpush1.bf16.msra.mxu0 0
      %568 = vmatprep.subr.bf16.mxu0 0
      %569 = vmatpush1.bf16.msra.mxu0 0
      %570 = vmatprep.subr.bf16.mxu0 0
      %571 = vmatpush1.bf16.msra.mxu0 0
      %572 = vmatprep.subr.bf16.mxu0 0
      %573 = vmatpush1.bf16.msra.mxu0 0
      %574 = vmatprep.subr.bf16.mxu0 0
      %575 = vmatpush1.bf16.msra.mxu0 0
      %576 = vmatprep.subr.bf16.mxu0 0
      %577 = vmatpush1.bf16.msra.mxu0 %v560
      %578 = vmatprep.subr.bf16.mxu0 0
      %579 = vmatpush2.bf16.msra.mxu0 0
      %580 = vmatprep.subr.bf16.mxu0 0
      %581 = vmatpush2.bf16.msra.mxu0 0
      %582 = vmatprep.subr.bf16.mxu0 0
      %583 = vmatpush2.bf16.msra.mxu0 0
      %584 = vmatprep.subr.bf16.mxu0 0
      %585 = vmatpush2.bf16.msra.mxu0 0
      %586 = vmatprep.subr.bf16.mxu0 0
      %587 = vmatpush2.bf16.msra.mxu0 0
      %588 = vmatprep.subr.bf16.mxu0 0
      %589 = vmatpush2.bf16.msra.mxu0 0
      %590 = vmatprep.subr.bf16.mxu0 0
      %591 = vmatpush2.bf16.msra.mxu0 0
      %592 = vmatprep.subr.bf16.mxu0 0
      %593 = vmatpush2.bf16.msra.mxu0 0
      %594 = vmatprep.mubr.bf16.mxu0 0
      %595 = vmatmul.mubr.bf16.gmra.mxu0 %v535
      %v596 = vpop.f32.mrf.mxu0
      %v597 = vadd.f32 %v531, %v596
      %v598 = vpop.f32.mrf.mxu0
      %v599 = vpop.f32.mrf.mxu0
      %v600 = vadd.f32 %v531, %v599
      %v601 = vpop.f32.mrf.mxu0
      %602 = vmatprep.mubr.bf16.mxu0 0
      %603 = vmatmul.mubr.bf16.gmra.mxu0 %v538
      %v604 = vpop.f32.mrf.mxu0
      %v605 = vadd.f32 %v531, %v604
      %v606 = vpop.f32.mrf.mxu0
      %v607 = vpop.f32.mrf.mxu0
      %v608 = vadd.f32 %v531, %v607
      %v609 = vpop.f32.mrf.mxu0
      %610 = vmatprep.mubr.bf16.mxu0 0
      %611 = vmatmul.mubr.bf16.gmra.mxu0 %v541
      %v612 = vpop.f32.mrf.mxu0
      %v613 = vadd.f32 %v531, %v612
      %v614 = vpop.f32.mrf.mxu0
      %v615 = vpop.f32.mrf.mxu0
      %v616 = vadd.f32 %v531, %v615
      %v617 = vpop.f32.mrf.mxu0
      %618 = vmatprep.mubr.bf16.mxu0 0
      %619 = vmatmul.mubr.bf16.gmra.mxu0 %v544
      %v620 = vpop.f32.mrf.mxu0
      %v621 = vadd.f32 %v531, %v620
      %v622 = vpop.f32.mrf.mxu0
      %v623 = vpop.f32.mrf.mxu0
      %v624 = vadd.f32 %v531, %v623
      %v625 = vpop.f32.mrf.mxu0
      %626 = vmatprep.mubr.bf16.mxu0 0
      %627 = vmatmul.mubr.bf16.gmra.mxu0 %v547
      %v628 = vpop.f32.mrf.mxu0
      %v629 = vadd.f32 %v531, %v628
      %v630 = vpop.f32.mrf.mxu0
      %v631 = vpop.f32.mrf.mxu0
      %v632 = vadd.f32 %v531, %v631
      %v633 = vpop.f32.mrf.mxu0
      %634 = vmatprep.mubr.bf16.mxu0 0
      %635 = vmatmul.mubr.bf16.gmra.mxu0 %v550
      %v636 = vpop.f32.mrf.mxu0
      %v637 = vadd.f32 %v531, %v636
      %v638 = vpop.f32.mrf.mxu0
      %v639 = vpop.f32.mrf.mxu0
      %v640 = vadd.f32 %v531, %v639
      %v641 = vpop.f32.mrf.mxu0
      %642 = vmatprep.mubr.bf16.mxu0 0
      %643 = vmatmul.mubr.bf16.gmra.mxu0 %v553
      %v644 = vpop.f32.mrf.mxu0
      %v645 = vadd.f32 %v531, %v644
      %v646 = vpop.f32.mrf.mxu0
      %v647 = vpop.f32.mrf.mxu0
      %v648 = vadd.f32 %v531, %v647
      %v649 = vpop.f32.mrf.mxu0
      %650 = vmatprep.mubr.bf16.mxu0 0
      %651 = vmatmul.mubr.bf16.gmra.mxu0 %v556
      %v652 = vpop.f32.mrf.mxu0
      %v653 = vadd.f32 %v531, %v652
      %v654 = vpop.f32.mrf.mxu0
      %v655 = vpop.f32.mrf.mxu0
      %v656 = vadd.f32 %v531, %v655
      %v657 = vpop.f32.mrf.mxu0
      %658 = vdwg.mxu0
      %v659 = vmax.f32 %v597, 0.0
      %v660 = vmax.f32 %v600, 0.0
      %v661 = vmax.f32 %v605, 0.0
      %v662 = vmax.f32 %v608, 0.0
      %v663 = vmax.f32 %v613, 0.0
      %v664 = vmax.f32 %v616, 0.0
      %v665 = vmax.f32 %v621, 0.0
      %v666 = vmax.f32 %v624, 0.0
      %v667 = vmax.f32 %v629, 0.0
      %v668 = vmax.f32 %v632, 0.0
      %v669 = vmax.f32 %v637, 0.0
      %v670 = vmax.f32 %v640, 0.0
      %v671 = vmax.f32 %v645, 0.0
      %v672 = vmax.f32 %v648, 0.0
      %v673 = vmax.f32 %v653, 0.0
      %v674 = vmax.f32 %v656, 0.0
      %v675 = vld [vmem:[%s3] sm:$0xf]
      %v676 = vld [vmem:[%s3 + $0x4] sm:$0xf]
      %v677 = vld [vmem:[%s3 + $0x8] sm:$0xf]
      %v678 = vld [vmem:[%s3 + $0xc] sm:$0xf]
      %v679 = vld [vmem:[%s3 + $0x10] sm:$0xf]
      %v680 = vld [vmem:[%s3 + $0x14] sm:$0xf]
      %v681 = vld [vmem:[%s3 + $0x18] sm:$0xf]
      %v682 = vld [vmem:[%s3 + $0x1c] sm:$0xf]
      %v683 = vld [vmem:[%s4] sm:$0x1]
      %v684 = vpack.c.bf16 %v660, %v659
      %v685 = vpack.c.bf16 %v662, %v661
      %v686 = vpack.c.bf16 %v664, %v663
      %v687 = vpack.c.bf16 %v666, %v665
      %v688 = vpack.c.bf16 %v668, %v667
      %v689 = vpack.c.bf16 %v670, %v669
      %v690 = vpack.c.bf16 %v672, %v671
      %v691 = vpack.c.bf16 %v674, %v673
      %v693 = vlaneseq
      %v694 = vshrl.u32 %v693, 7
      %v695 = vsub.s32 0, %v694
      %v696 = vrot.slane %v683, %v695
      %v706 = vunpack.c.l.b16 %v675
      %v707 = vunpack.c.l.b16 %v676
      %v708 = vunpack.c.l.b16 %v677
      %v709 = vunpack.c.l.b16 %v678
      %v710 = vunpack.c.l.b16 %v679
      %v711 = vunpack.c.l.b16 %v680
      %v712 = vunpack.c.l.b16 %v681
      %v713 = vunpack.c.l.b16 %v682
      %v714 = vpack.c.b16 %v707, %v706
      %v715 = vpack.c.b16 %v709, %v708
      %v716 = vpack.c.b16 %v711, %v710
      %v717 = vpack.c.b16 %v713, %v712
      %vm722 = vcmask 523264
      %v724 = vsel %vm722, %v684, 0
      %v727 = vsel %vm722, %v685, 0
      %v730 = vsel %vm722, %v686, 0
      %v733 = vsel %vm722, %v687, 0
      %v736 = vsel %vm722, %v688, 0
      %v739 = vsel %vm722, %v689, 0
      %v742 = vsel %vm722, %v690, 0
      %v745 = vsel %vm722, %v691, 0
      %747 = vmatprep.subr.bf16.mxu0 0
      %748 = vmatpush1.bf16.msra.mxu0 0
      %749 = vmatprep.subr.bf16.mxu0 0
      %750 = vmatpush1.bf16.msra.mxu0 0
      %751 = vmatprep.subr.bf16.mxu0 0
      %752 = vmatpush1.bf16.msra.mxu0 0
      %753 = vmatprep.subr.bf16.mxu0 0
      %754 = vmatpush1.bf16.msra.mxu0 0
      %755 = vmatprep.subr.bf16.mxu0 0
      %756 = vmatpush1.bf16.msra.mxu0 %v717
      %757 = vmatprep.subr.bf16.mxu0 0
      %758 = vmatpush1.bf16.msra.mxu0 %v716
      %759 = vmatprep.subr.bf16.mxu0 0
      %760 = vmatpush1.bf16.msra.mxu0 %v715
      %761 = vmatprep.subr.bf16.mxu0 0
      %762 = vmatpush1.bf16.msra.mxu0 %v714
      %763 = vmatprep.subr.bf16.mxu0 0
      %764 = vmatpush2.bf16.msra.mxu0 0
      %765 = vmatprep.subr.bf16.mxu0 0
      %766 = vmatpush2.bf16.msra.mxu0 0
      %767 = vmatprep.subr.bf16.mxu0 0
      %768 = vmatpush2.bf16.msra.mxu0 0
      %769 = vmatprep.subr.bf16.mxu0 0
      %770 = vmatpush2.bf16.msra.mxu0 0
      %771 = vmatprep.subr.bf16.mxu0 0
      %772 = vmatpush2.bf16.msra.mxu0 0
      %773 = vmatprep.subr.bf16.mxu0 0
      %774 = vmatpush2.bf16.msra.mxu0 0
      %775 = vmatprep.subr.bf16.mxu0 0
      %776 = vmatpush2.bf16.msra.mxu0 0
      %777 = vmatprep.subr.bf16.mxu0 0
      %778 = vmatpush2.bf16.msra.mxu0 0
      %779 = vmatprep.mubr.bf16.mxu0 0
      %780 = vmatmul.mubr.bf16.gmra.mxu0 %v724
      %v781 = vpop.f32.mrf.mxu0
      %v782 = vadd.f32 %v696, %v781
      %v783 = vpop.f32.mrf.mxu0
      %v784 = vpop.f32.mrf.mxu0
      %v785 = vadd.f32 %v696, %v784
      %v786 = vpop.f32.mrf.mxu0
      %787 = vmatprep.mubr.bf16.mxu0 0
      %788 = vmatmul.mubr.bf16.gmra.mxu0 %v727
      %v789 = vpop.f32.mrf.mxu0
      %v790 = vadd.f32 %v696, %v789
      %v791 = vpop.f32.mrf.mxu0
      %v792 = vpop.f32.mrf.mxu0
      %v793 = vadd.f32 %v696, %v792
      %v794 = vpop.f32.mrf.mxu0
      %795 = vmatprep.mubr.bf16.mxu0 0
      %796 = vmatmul.mubr.bf16.gmra.mxu0 %v730
      %v797 = vpop.f32.mrf.mxu0
      %v798 = vadd.f32 %v696, %v797
      %v799 = vpop.f32.mrf.mxu0
      %v800 = vpop.f32.mrf.mxu0
      %v801 = vadd.f32 %v696, %v800
      %v802 = vpop.f32.mrf.mxu0
      %803 = vmatprep.mubr.bf16.mxu0 0
      %804 = vmatmul.mubr.bf16.gmra.mxu0 %v733
      %v805 = vpop.f32.mrf.mxu0
      %v806 = vadd.f32 %v696, %v805
      %v807 = vpop.f32.mrf.mxu0
      %v808 = vpop.f32.mrf.mxu0
      %v809 = vadd.f32 %v696, %v808
      %v810 = vpop.f32.mrf.mxu0
      %811 = vmatprep.mubr.bf16.mxu0 0
      %812 = vmatmul.mubr.bf16.gmra.mxu0 %v736
      %v813 = vpop.f32.mrf.mxu0
      %v814 = vadd.f32 %v696, %v813
      %v815 = vpop.f32.mrf.mxu0
      %v816 = vpop.f32.mrf.mxu0
      %v817 = vadd.f32 %v696, %v816
      %v818 = vpop.f32.mrf.mxu0
      %819 = vmatprep.mubr.bf16.mxu0 0
      %820 = vmatmul.mubr.bf16.gmra.mxu0 %v739
      %v821 = vpop.f32.mrf.mxu0
      %v822 = vadd.f32 %v696, %v821
      %v823 = vpop.f32.mrf.mxu0
      %v824 = vpop.f32.mrf.mxu0
      %v825 = vadd.f32 %v696, %v824
      %v826 = vpop.f32.mrf.mxu0
      %827 = vmatprep.mubr.bf16.mxu0 0
      %828 = vmatmul.mubr.bf16.gmra.mxu0 %v742
      %v829 = vpop.f32.mrf.mxu0
      %v830 = vadd.f32 %v696, %v829
      %v831 = vpop.f32.mrf.mxu0
      %v832 = vpop.f32.mrf.mxu0
      %v833 = vadd.f32 %v696, %v832
      %v834 = vpop.f32.mrf.mxu0
      %835 = vmatprep.mubr.bf16.mxu0 0
      %836 = vmatmul.mubr.bf16.gmra.mxu0 %v745
      %v837 = vpop.f32.mrf.mxu0
      %v838 = vadd.f32 %v696, %v837
      %v839 = vpop.f32.mrf.mxu0
      %v840 = vpop.f32.mrf.mxu0
      %v841 = vadd.f32 %v696, %v840
      %v842 = vpop.f32.mrf.mxu0
      %843 = vdwg.mxu0
      %v844 = vmax.f32 %v782, 0.0
      %v845 = vmax.f32 %v785, 0.0
      %v846 = vmax.f32 %v790, 0.0
      %v847 = vmax.f32 %v793, 0.0
      %v848 = vmax.f32 %v798, 0.0
      %v849 = vmax.f32 %v801, 0.0
      %v850 = vmax.f32 %v806, 0.0
      %v851 = vmax.f32 %v809, 0.0
      %v852 = vmax.f32 %v814, 0.0
      %v853 = vmax.f32 %v817, 0.0
      %v854 = vmax.f32 %v822, 0.0
      %v855 = vmax.f32 %v825, 0.0
      %v856 = vmax.f32 %v830, 0.0
      %v857 = vmax.f32 %v833, 0.0
      %v858 = vmax.f32 %v838, 0.0
      %v859 = vmax.f32 %v841, 0.0
      %v860 = vld [vmem:[%s5] sm:$0xff]
      %v861 = vld [vmem:[%s5 + $0x8] sm:$0xff]
      %v862 = vld [vmem:[%s5 + $0x10] sm:$0xff]
      %v863 = vld [vmem:[%s5 + $0x18] sm:$0xff]
      %v864 = vld [vmem:[%s5 + $0x20] sm:$0xff]
      %v865 = vld [vmem:[%s5 + $0x28] sm:$0xff]
      %v866 = vld [vmem:[%s5 + $0x30] sm:$0xff]
      %v867 = vld [vmem:[%s5 + $0x38] sm:$0xff]
      %v868 = vld [vmem:[%s5 + $0x40] sm:$0xff]
      %v869 = vld [vmem:[%s5 + $0x48] sm:$0xff]
      %v870 = vld [vmem:[%s5 + $0x50] sm:$0xff]
      %v871 = vld [vmem:[%s5 + $0x58] sm:$0xff]
      %v872 = vld [vmem:[%s5 + $0x60] sm:$0xff]
      %v873 = vld [vmem:[%s5 + $0x68] sm:$0xff]
      %v874 = vld [vmem:[%s5 + $0x70] sm:$0xff]
      %v875 = vld [vmem:[%s5 + $0x78] sm:$0xff]
      %v876 = vld [vmem:[%s6] sm:$0x3]
      %v877 = vpack.c.bf16 %v845, %v844
      %v878 = vpack.c.bf16 %v847, %v846
      %v879 = vpack.c.bf16 %v849, %v848
      %v880 = vpack.c.bf16 %v851, %v850
      %v881 = vpack.c.bf16 %v853, %v852
      %v882 = vpack.c.bf16 %v855, %v854
      %v883 = vpack.c.bf16 %v857, %v856
      %v884 = vpack.c.bf16 %v859, %v858
      %v886 = vlaneseq
      %v887 = vshrl.u32 %v886, 7
      %v888 = vsub.s32 0, %v887
      %v889 = vrot.slane %v876, %v888
      %v890 = vlaneseq
      %v891 = vshrl.u32 %v890, 7
      %v892 = vsub.s32 1, %v891
      %v893 = vrot.slane %v876, %v892
      %v912 = vunpack.c.l.b16 %v860
      %v913 = vunpack.c.h.b16 %v860
      %v914 = vunpack.c.l.b16 %v861
      %v915 = vunpack.c.h.b16 %v861
      %v916 = vunpack.c.l.b16 %v862
      %v917 = vunpack.c.h.b16 %v862
      %v918 = vunpack.c.l.b16 %v863
      %v919 = vunpack.c.h.b16 %v863
      %v920 = vunpack.c.l.b16 %v864
      %v921 = vunpack.c.h.b16 %v864
      %v922 = vunpack.c.l.b16 %v865
      %v923 = vunpack.c.h.b16 %v865
      %v924 = vunpack.c.l.b16 %v866
      %v925 = vunpack.c.h.b16 %v866
      %v926 = vunpack.c.l.b16 %v867
      %v927 = vunpack.c.h.b16 %v867
      %v928 = vunpack.c.l.b16 %v868
      %v929 = vunpack.c.h.b16 %v868
      %v930 = vunpack.c.l.b16 %v869
      %v931 = vunpack.c.h.b16 %v869
      %v932 = vunpack.c.l.b16 %v870
      %v933 = vunpack.c.h.b16 %v870
      %v934 = vunpack.c.l.b16 %v871
      %v935 = vunpack.c.h.b16 %v871
      %v936 = vunpack.c.l.b16 %v872
      %v937 = vunpack.c.h.b16 %v872
      %v938 = vunpack.c.l.b16 %v873
      %v939 = vunpack.c.h.b16 %v873
      %v940 = vunpack.c.l.b16 %v874
      %v941 = vunpack.c.h.b16 %v874
      %v942 = vunpack.c.l.b16 %v875
      %v943 = vunpack.c.h.b16 %v875
      %v944 = vpack.c.b16 %v914, %v912
      %v945 = vpack.c.b16 %v915, %v913
      %v946 = vpack.c.b16 %v918, %v916
      %v947 = vpack.c.b16 %v919, %v917
      %v948 = vpack.c.b16 %v922, %v920
      %v949 = vpack.c.b16 %v923, %v921
      %v950 = vpack.c.b16 %v926, %v924
      %v951 = vpack.c.b16 %v927, %v925
      %v952 = vpack.c.b16 %v930, %v928
      %v953 = vpack.c.b16 %v931, %v929
      %v954 = vpack.c.b16 %v934, %v932
      %v955 = vpack.c.b16 %v935, %v933
      %v956 = vpack.c.b16 %v938, %v936
      %v957 = vpack.c.b16 %v939, %v937
      %v958 = vpack.c.b16 %v942, %v940
      %v959 = vpack.c.b16 %v943, %v941
      %976 = vmatprep.subr.bf16.mxu0 %v959
      %977 = vmatpush1.bf16.msra.mxu0 %v958
      %978 = vmatprep.subr.bf16.mxu0 %v957
      %979 = vmatpush1.bf16.msra.mxu0 %v956
      %980 = vmatprep.subr.bf16.mxu0 %v955
      %981 = vmatpush1.bf16.msra.mxu0 %v954
      %982 = vmatprep.subr.bf16.mxu0 %v953
      %983 = vmatpush1.bf16.msra.mxu0 %v952
      %984 = vmatprep.subr.bf16.mxu0 %v951
      %985 = vmatpush1.bf16.msra.mxu0 %v950
      %986 = vmatprep.subr.bf16.mxu0 %v949
      %987 = vmatpush1.bf16.msra.mxu0 %v948
      %988 = vmatprep.subr.bf16.mxu0 %v947
      %989 = vmatpush1.bf16.msra.mxu0 %v946
      %990 = vmatprep.subr.bf16.mxu0 %v945
      %991 = vmatpush1.bf16.msra.mxu0 %v944
      %992 = vmatprep.subr.bf16.mxu0 0
      %993 = vmatpush2.bf16.msra.mxu0 0
      %994 = vmatprep.subr.bf16.mxu0 0
      %995 = vmatpush2.bf16.msra.mxu0 0
      %996 = vmatprep.subr.bf16.mxu0 0
      %997 = vmatpush2.bf16.msra.mxu0 0
      %998 = vmatprep.subr.bf16.mxu0 0
      %999 = vmatpush2.bf16.msra.mxu0 0
      %1000 = vmatprep.subr.bf16.mxu0 0
      %1001 = vmatpush2.bf16.msra.mxu0 0
      %1002 = vmatprep.subr.bf16.mxu0 0
      %1003 = vmatpush2.bf16.msra.mxu0 0
      %1004 = vmatprep.subr.bf16.mxu0 0
      %1005 = vmatpush2.bf16.msra.mxu0 0
      %1006 = vmatprep.subr.bf16.mxu0 0
      %1007 = vmatpush2.bf16.msra.mxu0 0
      %1008 = vmatprep.mubr.bf16.mxu0 0
      %1009 = vmatmul.mubr.bf16.gmra.mxu0 %v877
      %v1010 = vpop.f32.mrf.mxu0
      %v1011 = vadd.f32 %v889, %v1010
      %v1012 = vpop.f32.mrf.mxu0
      %v1013 = vadd.f32 %v893, %v1012
      %v1014 = vpop.f32.mrf.mxu0
      %v1015 = vadd.f32 %v889, %v1014
      %v1016 = vpop.f32.mrf.mxu0
      %v1017 = vadd.f32 %v893, %v1016
      %1018 = vmatprep.mubr.bf16.mxu0 0
      %1019 = vmatmul.mubr.bf16.gmra.mxu0 %v878
      %v1020 = vpop.f32.mrf.mxu0
      %v1021 = vadd.f32 %v889, %v1020
      %v1022 = vpop.f32.mrf.mxu0
      %v1023 = vadd.f32 %v893, %v1022
      %v1024 = vpop.f32.mrf.mxu0
      %v1025 = vadd.f32 %v889, %v1024
      %v1026 = vpop.f32.mrf.mxu0
      %v1027 = vadd.f32 %v893, %v1026
      %1028 = vmatprep.mubr.bf16.mxu0 0
      %1029 = vmatmul.mubr.bf16.gmra.mxu0 %v879
      %v1030 = vpop.f32.mrf.mxu0
      %v1031 = vadd.f32 %v889, %v1030
      %v1032 = vpop.f32.mrf.mxu0
      %v1033 = vadd.f32 %v893, %v1032
      %v1034 = vpop.f32.mrf.mxu0
      %v1035 = vadd.f32 %v889, %v1034
      %v1036 = vpop.f32.mrf.mxu0
      %v1037 = vadd.f32 %v893, %v1036
      %1038 = vmatprep.mubr.bf16.mxu0 0
      %1039 = vmatmul.mubr.bf16.gmra.mxu0 %v880
      %v1040 = vpop.f32.mrf.mxu0
      %v1041 = vadd.f32 %v889, %v1040
      %v1042 = vpop.f32.mrf.mxu0
      %v1043 = vadd.f32 %v893, %v1042
      %v1044 = vpop.f32.mrf.mxu0
      %v1045 = vadd.f32 %v889, %v1044
      %v1046 = vpop.f32.mrf.mxu0
      %v1047 = vadd.f32 %v893, %v1046
      %1048 = vmatprep.mubr.bf16.mxu0 0
      %1049 = vmatmul.mubr.bf16.gmra.mxu0 %v881
      %v1050 = vpop.f32.mrf.mxu0
      %v1051 = vadd.f32 %v889, %v1050
      %v1052 = vpop.f32.mrf.mxu0
      %v1053 = vadd.f32 %v893, %v1052
      %v1054 = vpop.f32.mrf.mxu0
      %v1055 = vadd.f32 %v889, %v1054
      %v1056 = vpop.f32.mrf.mxu0
      %v1057 = vadd.f32 %v893, %v1056
      %1058 = vmatprep.mubr.bf16.mxu0 0
      %1059 = vmatmul.mubr.bf16.gmra.mxu0 %v882
      %v1060 = vpop.f32.mrf.mxu0
      %v1061 = vadd.f32 %v889, %v1060
      %v1062 = vpop.f32.mrf.mxu0
      %v1063 = vadd.f32 %v893, %v1062
      %v1064 = vpop.f32.mrf.mxu0
      %v1065 = vadd.f32 %v889, %v1064
      %v1066 = vpop.f32.mrf.mxu0
      %v1067 = vadd.f32 %v893, %v1066
      %1068 = vmatprep.mubr.bf16.mxu0 0
      %1069 = vmatmul.mubr.bf16.gmra.mxu0 %v883
      %v1070 = vpop.f32.mrf.mxu0
      %v1071 = vadd.f32 %v889, %v1070
      %v1072 = vpop.f32.mrf.mxu0
      %v1073 = vadd.f32 %v893, %v1072
      %v1074 = vpop.f32.mrf.mxu0
      %v1075 = vadd.f32 %v889, %v1074
      %v1076 = vpop.f32.mrf.mxu0
      %v1077 = vadd.f32 %v893, %v1076
      %1078 = vmatprep.mubr.bf16.mxu0 0
      %1079 = vmatmul.mubr.bf16.gmra.mxu0 %v884
      %v1080 = vpop.f32.mrf.mxu0
      %v1081 = vadd.f32 %v889, %v1080
      %v1082 = vpop.f32.mrf.mxu0
      %v1083 = vadd.f32 %v893, %v1082
      %v1084 = vpop.f32.mrf.mxu0
      %v1085 = vadd.f32 %v889, %v1084
      %v1086 = vpop.f32.mrf.mxu0
      %v1087 = vadd.f32 %v893, %v1086
      %1088 = vdwg.mxu0
      %v1089 = vmax.f32 %v1011, 0.0
      %v1090 = vmax.f32 %v1013, 0.0
      %v1091 = vmax.f32 %v1015, 0.0
      %v1092 = vmax.f32 %v1017, 0.0
      %v1093 = vmax.f32 %v1021, 0.0
      %v1094 = vmax.f32 %v1023, 0.0
      %v1095 = vmax.f32 %v1025, 0.0
      %v1096 = vmax.f32 %v1027, 0.0
      %v1097 = vmax.f32 %v1031, 0.0
      %v1098 = vmax.f32 %v1033, 0.0
      %v1099 = vmax.f32 %v1035, 0.0
      %v1100 = vmax.f32 %v1037, 0.0
      %v1101 = vmax.f32 %v1041, 0.0
      %v1102 = vmax.f32 %v1043, 0.0
      %v1103 = vmax.f32 %v1045, 0.0
      %v1104 = vmax.f32 %v1047, 0.0
      %v1105 = vmax.f32 %v1051, 0.0
      %v1106 = vmax.f32 %v1053, 0.0
      %v1107 = vmax.f32 %v1055, 0.0
      %v1108 = vmax.f32 %v1057, 0.0
      %v1109 = vmax.f32 %v1061, 0.0
      %v1110 = vmax.f32 %v1063, 0.0
      %v1111 = vmax.f32 %v1065, 0.0
      %v1112 = vmax.f32 %v1067, 0.0
      %v1113 = vmax.f32 %v1071, 0.0
      %v1114 = vmax.f32 %v1073, 0.0
      %v1115 = vmax.f32 %v1075, 0.0
      %v1116 = vmax.f32 %v1077, 0.0
      %v1117 = vmax.f32 %v1081, 0.0
      %v1118 = vmax.f32 %v1083, 0.0
      %v1119 = vmax.f32 %v1085, 0.0
      %v1120 = vmax.f32 %v1087, 0.0
      %v1121 = vld [vmem:[%s7] sm:$0xf]
      %v1122 = vld [vmem:[%s7 + $0x4] sm:$0xf]
      %v1123 = vld [vmem:[%s7 + $0x8] sm:$0xf]
      %v1124 = vld [vmem:[%s7 + $0xc] sm:$0xf]
      %v1125 = vld [vmem:[%s7 + $0x10] sm:$0xf]
      %v1126 = vld [vmem:[%s7 + $0x14] sm:$0xf]
      %v1127 = vld [vmem:[%s7 + $0x18] sm:$0xf]
      %v1128 = vld [vmem:[%s7 + $0x1c] sm:$0xf]
      %v1129 = vld [vmem:[%s7 + $0x20] sm:$0xf]
      %v1130 = vld [vmem:[%s7 + $0x24] sm:$0xf]
      %v1131 = vld [vmem:[%s7 + $0x28] sm:$0xf]
      %v1132 = vld [vmem:[%s7 + $0x2c] sm:$0xf]
      %v1133 = vld [vmem:[%s7 + $0x30] sm:$0xf]
      %v1134 = vld [vmem:[%s7 + $0x34] sm:$0xf]
      %v1135 = vld [vmem:[%s7 + $0x38] sm:$0xf]
      %v1136 = vld [vmem:[%s7 + $0x3c] sm:$0xf]
      %v1137 = vld [vmem:[%s7 + $0x40] sm:$0xf]
      %v1138 = vld [vmem:[%s7 + $0x44] sm:$0xf]
      %v1139 = vld [vmem:[%s7 + $0x48] sm:$0xf]
      %v1140 = vld [vmem:[%s7 + $0x4c] sm:$0xf]
      %v1141 = vld [vmem:[%s7 + $0x50] sm:$0xf]
      %v1142 = vld [vmem:[%s7 + $0x54] sm:$0xf]
      %v1143 = vld [vmem:[%s7 + $0x58] sm:$0xf]
      %v1144 = vld [vmem:[%s7 + $0x5c] sm:$0xf]
      %v1145 = vld [vmem:[%s7 + $0x60] sm:$0xf]
      %v1146 = vld [vmem:[%s7 + $0x64] sm:$0xf]
      %v1147 = vld [vmem:[%s7 + $0x68] sm:$0xf]
      %v1148 = vld [vmem:[%s7 + $0x6c] sm:$0xf]
      %v1149 = vld [vmem:[%s7 + $0x70] sm:$0xf]
      %v1150 = vld [vmem:[%s7 + $0x74] sm:$0xf]
      %v1151 = vld [vmem:[%s7 + $0x78] sm:$0xf]
      %v1152 = vld [vmem:[%s7 + $0x7c] sm:$0xf]
      %v1153 = vld [vmem:[%s8] sm:$0x1]
      %v1154 = vpack.c.bf16 %v1091, %v1089
      %v1155 = vpack.c.bf16 %v1092, %v1090
      %v1156 = vpack.c.bf16 %v1095, %v1093
      %v1157 = vpack.c.bf16 %v1096, %v1094
      %v1158 = vpack.c.bf16 %v1099, %v1097
      %v1159 = vpack.c.bf16 %v1100, %v1098
      %v1160 = vpack.c.bf16 %v1103, %v1101
      %v1161 = vpack.c.bf16 %v1104, %v1102
      %v1162 = vpack.c.bf16 %v1107, %v1105
      %v1163 = vpack.c.bf16 %v1108, %v1106
      %v1164 = vpack.c.bf16 %v1111, %v1109
      %v1165 = vpack.c.bf16 %v1112, %v1110
      %v1166 = vpack.c.bf16 %v1115, %v1113
      %v1167 = vpack.c.bf16 %v1116, %v1114
      %v1168 = vpack.c.bf16 %v1119, %v1117
      %v1169 = vpack.c.bf16 %v1120, %v1118
      %v1171 = vlaneseq
      %v1172 = vshrl.u32 %v1171, 7
      %v1173 = vsub.s32 0, %v1172
      %v1174 = vrot.slane %v1153, %v1173
      %v1208 = vunpack.c.l.b16 %v1121
      %v1209 = vunpack.c.l.b16 %v1122
      %v1210 = vunpack.c.l.b16 %v1123
      %v1211 = vunpack.c.l.b16 %v1124
      %v1212 = vunpack.c.l.b16 %v1125
      %v1213 = vunpack.c.l.b16 %v1126
      %v1214 = vunpack.c.l.b16 %v1127
      %v1215 = vunpack.c.l.b16 %v1128
      %v1216 = vunpack.c.l.b16 %v1129
      %v1217 = vunpack.c.l.b16 %v1130
      %v1218 = vunpack.c.l.b16 %v1131
      %v1219 = vunpack.c.l.b16 %v1132
      %v1220 = vunpack.c.l.b16 %v1133
      %v1221 = vunpack.c.l.b16 %v1134
      %v1222 = vunpack.c.l.b16 %v1135
      %v1223 = vunpack.c.l.b16 %v1136
      %v1224 = vunpack.c.l.b16 %v1137
      %v1225 = vunpack.c.l.b16 %v1138
      %v1226 = vunpack.c.l.b16 %v1139
      %v1227 = vunpack.c.l.b16 %v1140
      %v1228 = vunpack.c.l.b16 %v1141
      %v1229 = vunpack.c.l.b16 %v1142
      %v1230 = vunpack.c.l.b16 %v1143
      %v1231 = vunpack.c.l.b16 %v1144
      %v1232 = vunpack.c.l.b16 %v1145
      %v1233 = vunpack.c.l.b16 %v1146
      %v1234 = vunpack.c.l.b16 %v1147
      %v1235 = vunpack.c.l.b16 %v1148
      %v1236 = vunpack.c.l.b16 %v1149
      %v1237 = vunpack.c.l.b16 %v1150
      %v1238 = vunpack.c.l.b16 %v1151
      %v1239 = vunpack.c.l.b16 %v1152
      %v1240 = vpack.c.b16 %v1209, %v1208
      %v1241 = vpack.c.b16 %v1211, %v1210
      %v1242 = vpack.c.b16 %v1213, %v1212
      %v1243 = vpack.c.b16 %v1215, %v1214
      %v1244 = vpack.c.b16 %v1217, %v1216
      %v1245 = vpack.c.b16 %v1219, %v1218
      %v1246 = vpack.c.b16 %v1221, %v1220
      %v1247 = vpack.c.b16 %v1223, %v1222
      %v1248 = vpack.c.b16 %v1225, %v1224
      %v1249 = vpack.c.b16 %v1227, %v1226
      %v1250 = vpack.c.b16 %v1229, %v1228
      %v1251 = vpack.c.b16 %v1231, %v1230
      %v1252 = vpack.c.b16 %v1233, %v1232
      %v1253 = vpack.c.b16 %v1235, %v1234
      %v1254 = vpack.c.b16 %v1237, %v1236
      %v1255 = vpack.c.b16 %v1239, %v1238
      %1272 = vmatprep.subr.bf16.mxu0 0
      %1273 = vmatpush1.bf16.msra.mxu0 %v1247
      %1274 = vmatprep.subr.bf16.mxu0 0
      %1275 = vmatpush1.bf16.msra.mxu0 %v1246
      %1276 = vmatprep.subr.bf16.mxu0 0
      %1277 = vmatpush1.bf16.msra.mxu0 %v1245
      %1278 = vmatprep.subr.bf16.mxu0 0
      %1279 = vmatpush1.bf16.msra.mxu0 %v1244
      %1280 = vmatprep.subr.bf16.mxu0 0
      %1281 = vmatpush1.bf16.msra.mxu0 %v1243
      %1282 = vmatprep.subr.bf16.mxu0 0
      %1283 = vmatpush1.bf16.msra.mxu0 %v1242
      %1284 = vmatprep.subr.bf16.mxu0 0
      %1285 = vmatpush1.bf16.msra.mxu0 %v1241
      %1286 = vmatprep.subr.bf16.mxu0 0
      %1287 = vmatpush1.bf16.msra.mxu0 %v1240
      %1288 = vmatprep.subr.bf16.mxu0 0
      %1289 = vmatpush2.bf16.msra.mxu0 %v1255
      %1290 = vmatprep.subr.bf16.mxu0 0
      %1291 = vmatpush2.bf16.msra.mxu0 %v1254
      %1292 = vmatprep.subr.bf16.mxu0 0
      %1293 = vmatpush2.bf16.msra.mxu0 %v1253
      %1294 = vmatprep.subr.bf16.mxu0 0
      %1295 = vmatpush2.bf16.msra.mxu0 %v1252
      %1296 = vmatprep.subr.bf16.mxu0 0
      %1297 = vmatpush2.bf16.msra.mxu0 %v1251
      %1298 = vmatprep.subr.bf16.mxu0 0
      %1299 = vmatpush2.bf16.msra.mxu0 %v1250
      %1300 = vmatprep.subr.bf16.mxu0 0
      %1301 = vmatpush2.bf16.msra.mxu0 %v1249
      %1302 = vmatprep.subr.bf16.mxu0 0
      %1303 = vmatpush2.bf16.msra.mxu0 %v1248
      %1304 = vmatprep.mubr.bf16.mxu0 %v1155
      %1305 = vmatmul.mubr.bf16.gmra.mxu0 %v1154
      %v1306 = vpop.f32.mrf.mxu0
      %v1307 = vadd.f32 %v1174, %v1306
      %v1308 = vpop.f32.mrf.mxu0
      %v1309 = vpop.f32.mrf.mxu0
      %v1310 = vadd.f32 %v1174, %v1309
      %v1311 = vpop.f32.mrf.mxu0
      %1312 = vmatprep.mubr.bf16.mxu0 %v1157
      %1313 = vmatmul.mubr.bf16.gmra.mxu0 %v1156
      %v1314 = vpop.f32.mrf.mxu0
      %v1315 = vadd.f32 %v1174, %v1314
      %v1316 = vpop.f32.mrf.mxu0
      %v1317 = vpop.f32.mrf.mxu0
      %v1318 = vadd.f32 %v1174, %v1317
      %v1319 = vpop.f32.mrf.mxu0
      %1320 = vmatprep.mubr.bf16.mxu0 %v1159
      %1321 = vmatmul.mubr.bf16.gmra.mxu0 %v1158
      %v1322 = vpop.f32.mrf.mxu0
      %v1323 = vadd.f32 %v1174, %v1322
      %v1324 = vpop.f32.mrf.mxu0
      %v1325 = vpop.f32.mrf.mxu0
      %v1326 = vadd.f32 %v1174, %v1325
      %v1327 = vpop.f32.mrf.mxu0
      %1328 = vmatprep.mubr.bf16.mxu0 %v1161
      %1329 = vmatmul.mubr.bf16.gmra.mxu0 %v1160
      %v1330 = vpop.f32.mrf.mxu0
      %v1331 = vadd.f32 %v1174, %v1330
      %v1332 = vpop.f32.mrf.mxu0
      %v1333 = vpop.f32.mrf.mxu0
      %v1334 = vadd.f32 %v1174, %v1333
      %v1335 = vpop.f32.mrf.mxu0
      %1336 = vmatprep.mubr.bf16.mxu0 %v1163
      %1337 = vmatmul.mubr.bf16.gmra.mxu0 %v1162
      %v1338 = vpop.f32.mrf.mxu0
      %v1339 = vadd.f32 %v1174, %v1338
      %v1340 = vpop.f32.mrf.mxu0
      %v1341 = vpop.f32.mrf.mxu0
      %v1342 = vadd.f32 %v1174, %v1341
      %v1343 = vpop.f32.mrf.mxu0
      %1344 = vmatprep.mubr.bf16.mxu0 %v1165
      %1345 = vmatmul.mubr.bf16.gmra.mxu0 %v1164
      %v1346 = vpop.f32.mrf.mxu0
      %v1347 = vadd.f32 %v1174, %v1346
      %v1348 = vpop.f32.mrf.mxu0
      %v1349 = vpop.f32.mrf.mxu0
      %v1350 = vadd.f32 %v1174, %v1349
      %v1351 = vpop.f32.mrf.mxu0
      %1352 = vmatprep.mubr.bf16.mxu0 %v1167
      %1353 = vmatmul.mubr.bf16.gmra.mxu0 %v1166
      %v1354 = vpop.f32.mrf.mxu0
      %v1355 = vadd.f32 %v1174, %v1354
      %v1356 = vpop.f32.mrf.mxu0
      %v1357 = vpop.f32.mrf.mxu0
      %v1358 = vadd.f32 %v1174, %v1357
      %v1359 = vpop.f32.mrf.mxu0
      %1360 = vmatprep.mubr.bf16.mxu0 %v1169
      %1361 = vmatmul.mubr.bf16.gmra.mxu0 %v1168
      %v1362 = vpop.f32.mrf.mxu0
      %v1363 = vadd.f32 %v1174, %v1362
      %v1364 = vpop.f32.mrf.mxu0
      %v1365 = vpop.f32.mrf.mxu0
      %v1366 = vadd.f32 %v1174, %v1365
      %v1367 = vpop.f32.mrf.mxu0
      %1368 = vdwg.mxu0
      %v1369 = vmax.f32 %v1307, 0.0
      %v1370 = vmax.f32 %v1310, 0.0
      %v1371 = vmax.f32 %v1315, 0.0
      %v1372 = vmax.f32 %v1318, 0.0
      %v1373 = vmax.f32 %v1323, 0.0
      %v1374 = vmax.f32 %v1326, 0.0
      %v1375 = vmax.f32 %v1331, 0.0
      %v1376 = vmax.f32 %v1334, 0.0
      %v1377 = vmax.f32 %v1339, 0.0
      %v1378 = vmax.f32 %v1342, 0.0
      %v1379 = vmax.f32 %v1347, 0.0
      %v1380 = vmax.f32 %v1350, 0.0
      %v1381 = vmax.f32 %v1355, 0.0
      %v1382 = vmax.f32 %v1358, 0.0
      %v1383 = vmax.f32 %v1363, 0.0
      %v1384 = vmax.f32 %v1366, 0.0
      %v1385 = vld [vmem:[%s9] sm:$0xf]
      %v1386 = vld [vmem:[%s9 + $0x4] sm:$0xf]
      %v1387 = vld [vmem:[%s9 + $0x8] sm:$0xf]
      %v1388 = vld [vmem:[%s9 + $0xc] sm:$0xf]
      %v1389 = vld [vmem:[%s9 + $0x10] sm:$0xf]
      %v1390 = vld [vmem:[%s9 + $0x14] sm:$0xf]
      %v1391 = vld [vmem:[%s9 + $0x18] sm:$0xf]
      %v1392 = vld [vmem:[%s9 + $0x1c] sm:$0xf]
      %v1393 = vld [vmem:[%s9 + $0x20] sm:$0xf]
      %v1394 = vld [vmem:[%s9 + $0x24] sm:$0xf]
      %v1395 = vld [vmem:[%s9 + $0x28] sm:$0xf]
      %v1396 = vld [vmem:[%s9 + $0x2c] sm:$0xf]
      %v1397 = vld [vmem:[%s9 + $0x30] sm:$0xf]
      %v1398 = vld [vmem:[%s9 + $0x34] sm:$0xf]
      %v1399 = vld [vmem:[%s9 + $0x38] sm:$0xf]
      %v1400 = vld [vmem:[%s9 + $0x3c] sm:$0xf]
      %v1401 = vld [vmem:[%s10] sm:$0x1]
      %v1402 = vpack.c.bf16 %v1370, %v1369
      %v1403 = vpack.c.bf16 %v1372, %v1371
      %v1404 = vpack.c.bf16 %v1374, %v1373
      %v1405 = vpack.c.bf16 %v1376, %v1375
      %v1406 = vpack.c.bf16 %v1378, %v1377
      %v1407 = vpack.c.bf16 %v1380, %v1379
      %v1408 = vpack.c.bf16 %v1382, %v1381
      %v1409 = vpack.c.bf16 %v1384, %v1383
      %v1411 = vlaneseq
      %v1412 = vshrl.u32 %v1411, 7
      %v1413 = vsub.s32 0, %v1412
      %v1414 = vrot.slane %v1401, %v1413
      %v1432 = vunpack.c.l.b16 %v1385
      %v1433 = vunpack.c.l.b16 %v1386
      %v1434 = vunpack.c.l.b16 %v1387
      %v1435 = vunpack.c.l.b16 %v1388
      %v1436 = vunpack.c.l.b16 %v1389
      %v1437 = vunpack.c.l.b16 %v1390
      %v1438 = vunpack.c.l.b16 %v1391
      %v1439 = vunpack.c.l.b16 %v1392
      %v1440 = vunpack.c.l.b16 %v1393
      %v1441 = vunpack.c.l.b16 %v1394
      %v1442 = vunpack.c.l.b16 %v1395
      %v1443 = vunpack.c.l.b16 %v1396
      %v1444 = vunpack.c.l.b16 %v1397
      %v1445 = vunpack.c.l.b16 %v1398
      %v1446 = vunpack.c.l.b16 %v1399
      %v1447 = vunpack.c.l.b16 %v1400
      %v1448 = vpack.c.b16 %v1433, %v1432
      %v1449 = vpack.c.b16 %v1435, %v1434
      %v1450 = vpack.c.b16 %v1437, %v1436
      %v1451 = vpack.c.b16 %v1439, %v1438
      %v1452 = vpack.c.b16 %v1441, %v1440
      %v1453 = vpack.c.b16 %v1443, %v1442
      %v1454 = vpack.c.b16 %v1445, %v1444
      %v1455 = vpack.c.b16 %v1447, %v1446
      %1464 = vmatprep.subr.bf16.mxu0 0
      %1465 = vmatpush1.bf16.msra.mxu0 %v1455
      %1466 = vmatprep.subr.bf16.mxu0 0
      %1467 = vmatpush1.bf16.msra.mxu0 %v1454
      %1468 = vmatprep.subr.bf16.mxu0 0
      %1469 = vmatpush1.bf16.msra.mxu0 %v1453
      %1470 = vmatprep.subr.bf16.mxu0 0
      %1471 = vmatpush1.bf16.msra.mxu0 %v1452
      %1472 = vmatprep.subr.bf16.mxu0 0
      %1473 = vmatpush1.bf16.msra.mxu0 %v1451
      %1474 = vmatprep.subr.bf16.mxu0 0
      %1475 = vmatpush1.bf16.msra.mxu0 %v1450
      %1476 = vmatprep.subr.bf16.mxu0 0
      %1477 = vmatpush1.bf16.msra.mxu0 %v1449
      %1478 = vmatprep.subr.bf16.mxu0 0
      %1479 = vmatpush1.bf16.msra.mxu0 %v1448
      %1480 = vmatprep.subr.bf16.mxu0 0
      %1481 = vmatpush2.bf16.msra.mxu0 0
      %1482 = vmatprep.subr.bf16.mxu0 0
      %1483 = vmatpush2.bf16.msra.mxu0 0
      %1484 = vmatprep.subr.bf16.mxu0 0
      %1485 = vmatpush2.bf16.msra.mxu0 0
      %1486 = vmatprep.subr.bf16.mxu0 0
      %1487 = vmatpush2.bf16.msra.mxu0 0
      %1488 = vmatprep.subr.bf16.mxu0 0
      %1489 = vmatpush2.bf16.msra.mxu0 0
      %1490 = vmatprep.subr.bf16.mxu0 0
      %1491 = vmatpush2.bf16.msra.mxu0 0
      %1492 = vmatprep.subr.bf16.mxu0 0
      %1493 = vmatpush2.bf16.msra.mxu0 0
      %1494 = vmatprep.subr.bf16.mxu0 0
      %1495 = vmatpush2.bf16.msra.mxu0 0
      %1496 = vmatprep.mubr.bf16.mxu0 0
      %1497 = vmatmul.mubr.bf16.gmra.mxu0 %v1402
      %v1498 = vpop.f32.mrf.mxu0
      %v1499 = vadd.f32 %v1414, %v1498
      %v1500 = vpop.f32.mrf.mxu0
      %v1501 = vpop.f32.mrf.mxu0
      %v1502 = vadd.f32 %v1414, %v1501
      %v1503 = vpop.f32.mrf.mxu0
      %1504 = vmatprep.mubr.bf16.mxu0 0
      %1505 = vmatmul.mubr.bf16.gmra.mxu0 %v1403
      %v1506 = vpop.f32.mrf.mxu0
      %v1507 = vadd.f32 %v1414, %v1506
      %v1508 = vpop.f32.mrf.mxu0
      %v1509 = vpop.f32.mrf.mxu0
      %v1510 = vadd.f32 %v1414, %v1509
      %v1511 = vpop.f32.mrf.mxu0
      %1512 = vmatprep.mubr.bf16.mxu0 0
      %1513 = vmatmul.mubr.bf16.gmra.mxu0 %v1404
      %v1514 = vpop.f32.mrf.mxu0
      %v1515 = vadd.f32 %v1414, %v1514
      %v1516 = vpop.f32.mrf.mxu0
      %v1517 = vpop.f32.mrf.mxu0
      %v1518 = vadd.f32 %v1414, %v1517
      %v1519 = vpop.f32.mrf.mxu0
      %1520 = vmatprep.mubr.bf16.mxu0 0
      %1521 = vmatmul.mubr.bf16.gmra.mxu0 %v1405
      %v1522 = vpop.f32.mrf.mxu0
      %v1523 = vadd.f32 %v1414, %v1522
      %v1524 = vpop.f32.mrf.mxu0
      %v1525 = vpop.f32.mrf.mxu0
      %v1526 = vadd.f32 %v1414, %v1525
      %v1527 = vpop.f32.mrf.mxu0
      %1528 = vmatprep.mubr.bf16.mxu0 0
      %1529 = vmatmul.mubr.bf16.gmra.mxu0 %v1406
      %v1530 = vpop.f32.mrf.mxu0
      %v1531 = vadd.f32 %v1414, %v1530
      %v1532 = vpop.f32.mrf.mxu0
      %v1533 = vpop.f32.mrf.mxu0
      %v1534 = vadd.f32 %v1414, %v1533
      %v1535 = vpop.f32.mrf.mxu0
      %1536 = vmatprep.mubr.bf16.mxu0 0
      %1537 = vmatmul.mubr.bf16.gmra.mxu0 %v1407
      %v1538 = vpop.f32.mrf.mxu0
      %v1539 = vadd.f32 %v1414, %v1538
      %v1540 = vpop.f32.mrf.mxu0
      %v1541 = vpop.f32.mrf.mxu0
      %v1542 = vadd.f32 %v1414, %v1541
      %v1543 = vpop.f32.mrf.mxu0
      %1544 = vmatprep.mubr.bf16.mxu0 0
      %1545 = vmatmul.mubr.bf16.gmra.mxu0 %v1408
      %v1546 = vpop.f32.mrf.mxu0
      %v1547 = vadd.f32 %v1414, %v1546
      %v1548 = vpop.f32.mrf.mxu0
      %v1549 = vpop.f32.mrf.mxu0
      %v1550 = vadd.f32 %v1414, %v1549
      %v1551 = vpop.f32.mrf.mxu0
      %1552 = vmatprep.mubr.bf16.mxu0 0
      %1553 = vmatmul.mubr.bf16.gmra.mxu0 %v1409
      %v1554 = vpop.f32.mrf.mxu0
      %v1555 = vadd.f32 %v1414, %v1554
      %v1556 = vpop.f32.mrf.mxu0
      %v1557 = vpop.f32.mrf.mxu0
      %v1558 = vadd.f32 %v1414, %v1557
      %v1559 = vpop.f32.mrf.mxu0
      %1560 = vdwg.mxu0
      %v1561 = vmax.f32 %v1499, 0.0
      %v1562 = vmax.f32 %v1502, 0.0
      %v1563 = vmax.f32 %v1507, 0.0
      %v1564 = vmax.f32 %v1510, 0.0
      %v1565 = vmax.f32 %v1515, 0.0
      %v1566 = vmax.f32 %v1518, 0.0
      %v1567 = vmax.f32 %v1523, 0.0
      %v1568 = vmax.f32 %v1526, 0.0
      %v1569 = vmax.f32 %v1531, 0.0
      %v1570 = vmax.f32 %v1534, 0.0
      %v1571 = vmax.f32 %v1539, 0.0
      %v1572 = vmax.f32 %v1542, 0.0
      %v1573 = vmax.f32 %v1547, 0.0
      %v1574 = vmax.f32 %v1550, 0.0
      %v1575 = vmax.f32 %v1555, 0.0
      %v1576 = vmax.f32 %v1558, 0.0
      %v1577 = vld [vmem:[%s11] sm:$0xf]
      %v1578 = vld [vmem:[%s11 + $0x4] sm:$0xf]
      %v1579 = vld [vmem:[%s11 + $0x8] sm:$0xf]
      %v1580 = vld [vmem:[%s11 + $0xc] sm:$0xf]
      %v1581 = vld [vmem:[%s11 + $0x10] sm:$0xf]
      %v1582 = vld [vmem:[%s11 + $0x14] sm:$0xf]
      %v1583 = vld [vmem:[%s11 + $0x18] sm:$0xf]
      %v1584 = vld [vmem:[%s11 + $0x1c] sm:$0xf]
      %v1585 = vld [vmem:[%s12] sm:$0x1]
      %v1586 = vpack.c.bf16 %v1562, %v1561
      %v1587 = vpack.c.bf16 %v1564, %v1563
      %v1588 = vpack.c.bf16 %v1566, %v1565
      %v1589 = vpack.c.bf16 %v1568, %v1567
      %v1590 = vpack.c.bf16 %v1570, %v1569
      %v1591 = vpack.c.bf16 %v1572, %v1571
      %v1592 = vpack.c.bf16 %v1574, %v1573
      %v1593 = vpack.c.bf16 %v1576, %v1575
      %v1595 = vlaneseq
      %v1596 = vshrl.u32 %v1595, 7
      %v1597 = vsub.s32 0, %v1596
      %v1598 = vrot.slane %v1585, %v1597
      %v1608 = vunpack.c.l.b16 %v1577
      %v1609 = vunpack.c.l.b16 %v1578
      %v1610 = vunpack.c.l.b16 %v1579
      %v1611 = vunpack.c.l.b16 %v1580
      %v1612 = vunpack.c.l.b16 %v1581
      %v1613 = vunpack.c.l.b16 %v1582
      %v1614 = vunpack.c.l.b16 %v1583
      %v1615 = vunpack.c.l.b16 %v1584
      %v1616 = vpack.c.b16 %v1609, %v1608
      %v1617 = vpack.c.b16 %v1611, %v1610
      %v1618 = vpack.c.b16 %v1613, %v1612
      %v1619 = vpack.c.b16 %v1615, %v1614
      %v1625 = vsel %vm722, %v1586, 0
      %v1628 = vsel %vm722, %v1587, 0
      %v1631 = vsel %vm722, %v1588, 0
      %v1634 = vsel %vm722, %v1589, 0
      %v1637 = vsel %vm722, %v1590, 0
      %v1640 = vsel %vm722, %v1591, 0
      %v1643 = vsel %vm722, %v1592, 0
      %v1646 = vsel %vm722, %v1593, 0
      %1648 = vmatprep.subr.bf16.mxu0 0
      %1649 = vmatpush1.bf16.msra.mxu0 0
      %1650 = vmatprep.subr.bf16.mxu0 0
      %1651 = vmatpush1.bf16.msra.mxu0 0
      %1652 = vmatprep.subr.bf16.mxu0 0
      %1653 = vmatpush1.bf16.msra.mxu0 0
      %1654 = vmatprep.subr.bf16.mxu0 0
      %1655 = vmatpush1.bf16.msra.mxu0 0
      %1656 = vmatprep.subr.bf16.mxu0 0
      %1657 = vmatpush1.bf16.msra.mxu0 %v1619
      %1658 = vmatprep.subr.bf16.mxu0 0
      %1659 = vmatpush1.bf16.msra.mxu0 %v1618
      %1660 = vmatprep.subr.bf16.mxu0 0
      %1661 = vmatpush1.bf16.msra.mxu0 %v1617
      %1662 = vmatprep.subr.bf16.mxu0 0
      %1663 = vmatpush1.bf16.msra.mxu0 %v1616
      %1664 = vmatprep.subr.bf16.mxu0 0
      %1665 = vmatpush2.bf16.msra.mxu0 0
      %1666 = vmatprep.subr.bf16.mxu0 0
      %1667 = vmatpush2.bf16.msra.mxu0 0
      %1668 = vmatprep.subr.bf16.mxu0 0
      %1669 = vmatpush2.bf16.msra.mxu0 0
      %1670 = vmatprep.subr.bf16.mxu0 0
      %1671 = vmatpush2.bf16.msra.mxu0 0
      %1672 = vmatprep.subr.bf16.mxu0 0
      %1673 = vmatpush2.bf16.msra.mxu0 0
      %1674 = vmatprep.subr.bf16.mxu0 0
      %1675 = vmatpush2.bf16.msra.mxu0 0
      %1676 = vmatprep.subr.bf16.mxu0 0
      %1677 = vmatpush2.bf16.msra.mxu0 0
      %1678 = vmatprep.subr.bf16.mxu0 0
      %1679 = vmatpush2.bf16.msra.mxu0 0
      %1680 = vmatprep.mubr.bf16.mxu0 0
      %1681 = vmatmul.mubr.bf16.gmra.mxu0 %v1625
      %v1682 = vpop.f32.mrf.mxu0
      %v1683 = vadd.f32 %v1598, %v1682
      %v1684 = vpop.f32.mrf.mxu0
      %v1685 = vpop.f32.mrf.mxu0
      %v1686 = vadd.f32 %v1598, %v1685
      %v1687 = vpop.f32.mrf.mxu0
      %1688 = vmatprep.mubr.bf16.mxu0 0
      %1689 = vmatmul.mubr.bf16.gmra.mxu0 %v1628
      %v1690 = vpop.f32.mrf.mxu0
      %v1691 = vadd.f32 %v1598, %v1690
      %v1692 = vpop.f32.mrf.mxu0
      %v1693 = vpop.f32.mrf.mxu0
      %v1694 = vadd.f32 %v1598, %v1693
      %v1695 = vpop.f32.mrf.mxu0
      %1696 = vmatprep.mubr.bf16.mxu0 0
      %1697 = vmatmul.mubr.bf16.gmra.mxu0 %v1631
      %v1698 = vpop.f32.mrf.mxu0
      %v1699 = vadd.f32 %v1598, %v1698
      %v1700 = vpop.f32.mrf.mxu0
      %v1701 = vpop.f32.mrf.mxu0
      %v1702 = vadd.f32 %v1598, %v1701
      %v1703 = vpop.f32.mrf.mxu0
      %1704 = vmatprep.mubr.bf16.mxu0 0
      %1705 = vmatmul.mubr.bf16.gmra.mxu0 %v1634
      %v1706 = vpop.f32.mrf.mxu0
      %v1707 = vadd.f32 %v1598, %v1706
      %v1708 = vpop.f32.mrf.mxu0
      %v1709 = vpop.f32.mrf.mxu0
      %v1710 = vadd.f32 %v1598, %v1709
      %v1711 = vpop.f32.mrf.mxu0
      %1712 = vmatprep.mubr.bf16.mxu0 0
      %1713 = vmatmul.mubr.bf16.gmra.mxu0 %v1637
      %v1714 = vpop.f32.mrf.mxu0
      %v1715 = vadd.f32 %v1598, %v1714
      %v1716 = vpop.f32.mrf.mxu0
      %v1717 = vpop.f32.mrf.mxu0
      %v1718 = vadd.f32 %v1598, %v1717
      %v1719 = vpop.f32.mrf.mxu0
      %1720 = vmatprep.mubr.bf16.mxu0 0
      %1721 = vmatmul.mubr.bf16.gmra.mxu0 %v1640
      %v1722 = vpop.f32.mrf.mxu0
      %v1723 = vadd.f32 %v1598, %v1722
      %v1724 = vpop.f32.mrf.mxu0
      %v1725 = vpop.f32.mrf.mxu0
      %v1726 = vadd.f32 %v1598, %v1725
      %v1727 = vpop.f32.mrf.mxu0
      %1728 = vmatprep.mubr.bf16.mxu0 0
      %1729 = vmatmul.mubr.bf16.gmra.mxu0 %v1643
      %v1730 = vpop.f32.mrf.mxu0
      %v1731 = vadd.f32 %v1598, %v1730
      %v1732 = vpop.f32.mrf.mxu0
      %v1733 = vpop.f32.mrf.mxu0
      %v1734 = vadd.f32 %v1598, %v1733
      %v1735 = vpop.f32.mrf.mxu0
      %1736 = vmatprep.mubr.bf16.mxu0 0
      %1737 = vmatmul.mubr.bf16.gmra.mxu0 %v1646
      %v1738 = vpop.f32.mrf.mxu0
      %v1739 = vadd.f32 %v1598, %v1738
      %v1740 = vpop.f32.mrf.mxu0
      %v1741 = vpop.f32.mrf.mxu0
      %v1742 = vadd.f32 %v1598, %v1741
      %v1743 = vpop.f32.mrf.mxu0
      %1744 = vdwg.mxu0
      %v1745 = vmax.f32 %v1683, 0.0
      %v1746 = vmax.f32 %v1686, 0.0
      %v1747 = vmax.f32 %v1691, 0.0
      %v1748 = vmax.f32 %v1694, 0.0
      %v1749 = vmax.f32 %v1699, 0.0
      %v1750 = vmax.f32 %v1702, 0.0
      %v1751 = vmax.f32 %v1707, 0.0
      %v1752 = vmax.f32 %v1710, 0.0
      %v1753 = vmax.f32 %v1715, 0.0
      %v1754 = vmax.f32 %v1718, 0.0
      %v1755 = vmax.f32 %v1723, 0.0
      %v1756 = vmax.f32 %v1726, 0.0
      %v1757 = vmax.f32 %v1731, 0.0
      %v1758 = vmax.f32 %v1734, 0.0
      %v1759 = vmax.f32 %v1739, 0.0
      %v1760 = vmax.f32 %v1742, 0.0
      %v1761 = vld [vmem:[%s13] sm:$0x1]
      %v1762 = vld [vmem:[#allocation2] sm:$0x1]
      %v1764 = vlaneseq
      %v1765 = vshrl.u32 %v1764, 7
      %v1766 = vsub.s32 0, %v1765
      %v1767 = vrot.slane %v1761, %v1766
      %v1769 = vmul.f32 %v1745, %v1767
      %v1770 = vmul.f32 %v1746, %v1767
      %v1771 = vmul.f32 %v1747, %v1767
      %v1772 = vmul.f32 %v1748, %v1767
      %v1773 = vmul.f32 %v1749, %v1767
      %v1774 = vmul.f32 %v1750, %v1767
      %v1775 = vmul.f32 %v1751, %v1767
      %v1776 = vmul.f32 %v1752, %v1767
      %v1777 = vmul.f32 %v1753, %v1767
      %v1778 = vmul.f32 %v1754, %v1767
      %v1779 = vmul.f32 %v1755, %v1767
      %v1780 = vmul.f32 %v1756, %v1767
      %v1781 = vmul.f32 %v1757, %v1767
      %v1782 = vmul.f32 %v1758, %v1767
      %v1783 = vmul.f32 %v1759, %v1767
      %v1784 = vmul.f32 %v1760, %v1767
      %vm1785 = vcmask 261120
      %v1786 = vsel %vm1785, %v1769, 0.0
      %1787 = vadd.xlane.f32.xlu0 %v1786
      %v1788 = vpop.xlane.xlu0 %1787
      %v1789 = vsel %vm1785, %v1770, 0.0
      %1790 = vadd.xlane.f32.xlu0 %v1789
      %v1791 = vpop.xlane.xlu0 %1790
      %v1792 = vsel %vm1785, %v1771, 0.0
      %1793 = vadd.xlane.f32.xlu0 %v1792
      %v1794 = vpop.xlane.xlu0 %1793
      %v1795 = vsel %vm1785, %v1772, 0.0
      %1796 = vadd.xlane.f32.xlu0 %v1795
      %v1797 = vpop.xlane.xlu0 %1796
      %v1798 = vsel %vm1785, %v1773, 0.0
      %1799 = vadd.xlane.f32.xlu0 %v1798
      %v1800 = vpop.xlane.xlu0 %1799
      %v1801 = vsel %vm1785, %v1774, 0.0
      %1802 = vadd.xlane.f32.xlu0 %v1801
      %v1803 = vpop.xlane.xlu0 %1802
      %v1804 = vsel %vm1785, %v1775, 0.0
      %1805 = vadd.xlane.f32.xlu0 %v1804
      %v1806 = vpop.xlane.xlu0 %1805
      %v1807 = vsel %vm1785, %v1776, 0.0
      %1808 = vadd.xlane.f32.xlu0 %v1807
      %v1809 = vpop.xlane.xlu0 %1808
      %v1810 = vsel %vm1785, %v1777, 0.0
      %1811 = vadd.xlane.f32.xlu0 %v1810
      %v1812 = vpop.xlane.xlu0 %1811
      %v1813 = vsel %vm1785, %v1778, 0.0
      %1814 = vadd.xlane.f32.xlu0 %v1813
      %v1815 = vpop.xlane.xlu0 %1814
      %v1816 = vsel %vm1785, %v1779, 0.0
      %1817 = vadd.xlane.f32.xlu0 %v1816
      %v1818 = vpop.xlane.xlu0 %1817
      %v1819 = vsel %vm1785, %v1780, 0.0
      %1820 = vadd.xlane.f32.xlu0 %v1819
      %v1821 = vpop.xlane.xlu0 %1820
      %v1822 = vsel %vm1785, %v1781, 0.0
      %1823 = vadd.xlane.f32.xlu0 %v1822
      %v1824 = vpop.xlane.xlu0 %1823
      %v1825 = vsel %vm1785, %v1782, 0.0
      %1826 = vadd.xlane.f32.xlu0 %v1825
      %v1827 = vpop.xlane.xlu0 %1826
      %v1828 = vsel %vm1785, %v1783, 0.0
      %1829 = vadd.xlane.f32.xlu0 %v1828
      %v1830 = vpop.xlane.xlu0 %1829
      %v1831 = vsel %vm1785, %v1784, 0.0
      %1832 = vadd.xlane.f32.xlu0 %v1831
      %v1833 = vpop.xlane.xlu0 %1832
      %v1835 = vlaneseq
      %v1836 = vshrl.u32 %v1835, 7
      %v1837 = vsub.s32 0, %v1836
      %v1838 = vrot.slane %v1762, %v1837
      %v1840 = vadd.f32 %v1788, %v1838
      %v1841 = vadd.f32 %v1791, %v1838
      %v1842 = vadd.f32 %v1794, %v1838
      %v1843 = vadd.f32 %v1797, %v1838
      %v1844 = vadd.f32 %v1800, %v1838
      %v1845 = vadd.f32 %v1803, %v1838
      %v1846 = vadd.f32 %v1806, %v1838
      %v1847 = vadd.f32 %v1809, %v1838
      %v1848 = vadd.f32 %v1812, %v1838
      %v1849 = vadd.f32 %v1815, %v1838
      %v1850 = vadd.f32 %v1818, %v1838
      %v1851 = vadd.f32 %v1821, %v1838
      %v1852 = vadd.f32 %v1824, %v1838
      %v1853 = vadd.f32 %v1827, %v1838
      %v1854 = vadd.f32 %v1830, %v1838
      %v1855 = vadd.f32 %v1833, %v1838
      %vm1856 = vcmask 7168
      %1857 = vst.msk [vmem:[%s498] sm:$0xff] %vm1856, %v1840
      %1858 = vst.msk [vmem:[%s498 + $0x8] sm:$0xff] %vm1856, %v1841
      %1859 = vst.msk [vmem:[%s498 + $0x10] sm:$0xff] %vm1856, %v1842
      %1860 = vst.msk [vmem:[%s498 + $0x18] sm:$0xff] %vm1856, %v1843
      %1861 = vst.msk [vmem:[%s498 + $0x20] sm:$0xff] %vm1856, %v1844
      %1862 = vst.msk [vmem:[%s498 + $0x28] sm:$0xff] %vm1856, %v1845
      %1863 = vst.msk [vmem:[%s498 + $0x30] sm:$0xff] %vm1856, %v1846
      %1864 = vst.msk [vmem:[%s498 + $0x38] sm:$0xff] %vm1856, %v1847
      %1865 = vst.msk [vmem:[%s498 + $0x40] sm:$0xff] %vm1856, %v1848
      %1866 = vst.msk [vmem:[%s498 + $0x48] sm:$0xff] %vm1856, %v1849
      %1867 = vst.msk [vmem:[%s498 + $0x50] sm:$0xff] %vm1856, %v1850
      %1868 = vst.msk [vmem:[%s498 + $0x58] sm:$0xff] %vm1856, %v1851
      %1869 = vst.msk [vmem:[%s498 + $0x60] sm:$0xff] %vm1856, %v1852
      %1870 = vst.msk [vmem:[%s498 + $0x68] sm:$0xff] %vm1856, %v1853
      %1871 = vst.msk [vmem:[%s498 + $0x70] sm:$0xff] %vm1856, %v1854
      %1872 = vst.msk [vmem:[%s498 + $0x78] sm:$0xff] %vm1856, %v1855
      %s1873 = smul.u32 16, %s28
      %p1874 = scmp.lt.s32.totalorder %s1873, 31
      %s1875 = scalar_select %p1874, %s1873, 31
      %s1876 = smul.addr %s1875, 8
      %s1877 = scalar_lea.vmem %s15, %s1876
      // Predicated region
      $region81: #{tpu_custom_call.1} parent=79 // pred_check
        %p1878 = pneg %p366
      $region82: #{tpu_custom_call.1} parent=79 // pred_check_branch
        %1880 = sbr.rel (%p1878) target = $region84
      $region83: #{tpu_custom_call.1} parent=79 // pred_region
        %s1881 = smul.u32 16, %s28
      $region84: #{tpu_custom_call.1} parent=79 // pred_fallthru
        _
    $region80: #{tpu_custom_call.1} parent=5 // pred_fallthru
      _
    %p1882 = scmp.le.s32.totalorder 2, %s23
    // Predicated region
    $region85: #{tpu_custom_call.1} parent=5 // pred_check
      %p1883 = pneg %p1882
    $region86: #{tpu_custom_call.1} parent=5 // pred_check_branch
      %1885 = sbr.rel (%p1883) target = $region88
    $region87: #{tpu_custom_call.1} parent=5 // pred_region
      %s1886 = ssub.s32 %s23, 2
      // Predicated region
      $region89: #{tpu_custom_call.1} parent=87 // pred_check
        %p1887 = pneg %p372
      $region90: #{tpu_custom_call.1} parent=87 // pred_check_branch
        %1889 = sbr.rel (%p1887) target = $region92
      $region91: #{tpu_custom_call.1} parent=87 // pred_region
        %s1890 = smul.u32 16, %s29
        %p1891 = scmp.lt.s32.totalorder %s1890, 31
        %s1892 = scalar_select %p1891, %s1890, 31
        %s1893 = smul.addr %s1892, 8
        %s1894 = scalar_lea.vmem %s15, %s1893
      $region92: #{tpu_custom_call.1} parent=87 // pred_fallthru
        _
    $region88: #{tpu_custom_call.1} parent=5 // pred_fallthru
      _
  $region6: #{tpu_custom_call.1} parent=0 // loop_footer
    %s27 = sadd.s32 1, %s23
  $region7: #{tpu_custom_call.1} parent=0 // loop_footer_branch
    %22 = sbr.rel target = $region3
  $region8: #{tpu_custom_call.1} parent=0 // loop_exit
    _

</llo_original>
